<compile_context>
chip_gen: v5e
topology: v5e:2x2
jax: 0.10.0
libtpu: 0.0.40
codegen_flags: <defaults>
</compile_context>

<pallas_src>
import jax
import jax.numpy as jnp
from jax.experimental import pallas as pl
from jax.experimental.pallas import tpu as pltpu


def self_attention_kernel(x_ref, w_ref, b_ref, gamma_ref, out_ref, attn_ref):
    # x_ref    : (NB, C, L)   NCW input block (NB batch elements)
    # w_ref    : (Ct, C)      fused [wq; wk; wv] 1x1-conv weights, Ct = 2*Cq + C
    # b_ref    : (Ct, 1)      fused [bq; bk; bv] biases (f32)
    # gamma_ref: (1, 1)       scalar, lives in SMEM
    # out_ref  : (NB, C, L)
    # attn_ref : (NB, L, L)
    nb = x_ref.shape[0]
    c = x_ref.shape[1]
    cq = (w_ref.shape[0] - c) // 2

    w = w_ref[...]                       # (Ct, C), matmul dtype (f32 or bf16)
    b = b_ref[...]                       # (Ct, 1), f32
    md = w.dtype
    gamma = gamma_ref[0, 0]

    for n in range(nb):                  # static, small unrolled batch loop
        xn = x_ref[n]                    # (C, L) f32

        # fused q/k/v projection: one (Ct,C) x (C,L) MXU matmul, f32 accumulate
        qkv = jnp.dot(w, xn.astype(md),
                      preferred_element_type=jnp.float32) + b        # (Ct, L)
        q = qkv[:cq]                     # (Cq, L)  sublane offset 0
        k = qkv[cq:2 * cq]               # (Cq, L)  sublane offset Cq
        v = qkv[2 * cq:]                 # (C,  L)  sublane offset 2*Cq

        # scores[i, j] = sum_d q[d, i] * k[d, j]   (== bmm(Q^T, K))
        scores = jax.lax.dot_general(
            q.astype(md), k.astype(md), (((0,), (0,)), ((), ())),
            preferred_element_type=jnp.float32)                      # (L, L)

        # row-wise softmax (f32), matches F.softmax(scores, dim=-1)
        m = jnp.max(scores, axis=-1, keepdims=True)
        e = jnp.exp(scores - m)
        attn = e * pl.reciprocal(jnp.sum(e, axis=-1, keepdims=True),
                                 approx=False)                       # (L, L)
        attn_ref[n] = attn

        # out[c, j] = sum_i v[c, i] * attn[i, j]   (== bmm(value, attn)), native MXU
        out = jnp.dot(v.astype(md), attn.astype(md),
                      preferred_element_type=jnp.float32)             # (C, L)

        out_ref[n] = gamma * out + xn    # f32 residual, lane-dense store


def self_attention(x, params, *, matmul_dtype=jnp.float32, max_batch_block=8):
    """x: (N, C, L) float32 (NCW, like PyTorch). Returns (out (N, C, L), attn (N, L, L))."""
    N, C, L = x.shape
    Cq = params["wq"].shape[0]
    Ct = 2 * Cq + C

    x = x.astype(jnp.float32)
    # fuse 1x1-conv weights/biases: NCW form means q = W @ x, so just squeeze + concat
    w_qkv = jnp.concatenate(
        [params["wq"][:, :, 0], params["wk"][:, :, 0], params["wv"][:, :, 0]],
        axis=0).astype(matmul_dtype)                                  # (Ct, C)
    b_qkv = jnp.concatenate(
        [params["bq"], params["bk"], params["bv"]]).reshape(Ct, 1).astype(jnp.float32)
    gamma = params["gamma"].reshape(1, 1).astype(jnp.float32)

    # batch block: largest divisor of N that is <= max_batch_block (collapses the grid
    # to a single step for small N, keeps >=1 element per step otherwise)
    nb = 1
    for d in range(1, min(N, max_batch_block) + 1):
        if N % d == 0:
            nb = d
    grid = (N // nb,)

    wbytes = int(jnp.dtype(matmul_dtype).itemsize)
    flops = N * (2 * L * C * Ct + 2 * L * L * Cq + 2 * L * L * C)
    bytes_accessed = 4 * (2 * N * C * L + N * L * L + Ct + 1) + wbytes * Ct * C

    out, attn = pl.pallas_call(
        self_attention_kernel,
        out_shape=(jax.ShapeDtypeStruct((N, C, L), jnp.float32),
                   jax.ShapeDtypeStruct((N, L, L), jnp.float32)),
        grid=grid,
        in_specs=[
            pl.BlockSpec((nb, C, L), lambda i: (i, 0, 0)),            # x (NCW, no transpose)
            pl.BlockSpec((Ct, C), lambda i: (0, 0)),                  # fused qkv weight
            pl.BlockSpec((Ct, 1), lambda i: (0, 0)),                  # fused qkv bias
            pl.BlockSpec(memory_space=pltpu.MemorySpace.SMEM),        # gamma scalar
        ],
        out_specs=(
            pl.BlockSpec((nb, C, L), lambda i: (i, 0, 0)),
            pl.BlockSpec((nb, L, L), lambda i: (i, 0, 0)),
        ),
        compiler_params=pltpu.CompilerParams(
            dimension_semantics=("parallel",),
            vmem_limit_bytes=32 * 1024 * 1024),
        cost_estimate=pl.CostEstimate(flops=flops,
                                      transcendentals=N * L * L,
                                      bytes_accessed=bytes_accessed),
    )(x, w_qkv, b_qkv, gamma)

    return out, attn


def _ref_forward(x, p):
    """Pure-JAX reference of the PyTorch forward (f32)."""
    q = jnp.einsum("dc,ncl->ndl", p["wq"][:, :, 0], x) + p["bq"][None, :, None]
    k = jnp.einsum("dc,ncl->ndl", p["wk"][:, :, 0], x) + p["bk"][None, :, None]
    v = jnp.einsum("dc,ncl->ndl", p["wv"][:, :, 0], x) + p["bv"][None, :, None]
    scores = jnp.einsum("ndi,ndj->nij", q, k)
    attn = jax.nn.softmax(scores, axis=-1)
    out = jnp.einsum("nci,nij->ncj", v, attn)
    return p["gamma"].reshape(()) * out + x, attn


if __name__ == "__main__":
    N, C, L = 2, 128, 128          # in_channels=128 -> query/key channels Cq = 16
    Cq = C // 8

    key = jax.random.PRNGKey(0)
    ks = jax.random.split(key, 8)
    params = {
        "wq": 0.1 * jax.random.normal(ks[0], (Cq, C, 1), jnp.float32),
        "bq": 0.1 * jax.random.normal(ks[1], (Cq,), jnp.float32),
        "wk": 0.1 * jax.random.normal(ks[2], (Cq, C, 1), jnp.float32),
        "bk": 0.1 * jax.random.normal(ks[3], (Cq,), jnp.float32),
        "wv": 0.1 * jax.random.normal(ks[4], (C, C, 1), jnp.float32),
        "bv": 0.1 * jax.random.normal(ks[5], (C,), jnp.float32),
        # PyTorch initializes gamma to 0; use a nonzero value so the attention
        # branch actually contributes to the correctness check.
        "gamma": jnp.full((1,), 0.5, jnp.float32),
    }
    x = jax.random.normal(ks[6], (N, C, L), jnp.float32)

    out, attn = self_attention(x, params)
    out = jax.block_until_ready(out)
    attn = jax.block_until_ready(attn)

    ref_out, ref_attn = _ref_forward(x, params)
    assert out.shape == (N, C, L) and attn.shape == (N, L, L), (out.shape, attn.shape)
    assert jnp.allclose(attn, ref_attn, rtol=1e-3, atol=1e-3), \
        float(jnp.abs(attn - ref_attn).max())
    assert jnp.allclose(out, ref_out, rtol=1e-3, atol=1e-3), \
        float(jnp.abs(out - ref_out).max())

    print("KERNEL_OK")
</pallas_src>

<mosaic_0001>
module attributes {stable_mosaic.version = 11 : i64} {
  func.func @self_attention_kernel(%arg0: i32, %arg1: memref<2x128x128xf32, #tpu.memory_space<vmem>>, %arg2: memref<160x128xf32, #tpu.memory_space<vmem>>, %arg3: memref<160x1xf32, #tpu.memory_space<vmem>>, %arg4: memref<1x1xf32, #tpu.memory_space<smem>>, %arg5: memref<2x128x128xf32, #tpu.memory_space<vmem>>, %arg6: memref<2x128x128xf32, #tpu.memory_space<vmem>>) attributes {dimension_semantics = [#tpu.dimension_semantics<parallel>], iteration_bounds = array<i64: 1>, scalar_prefetch = 0 : i64, scratch_operands = 0 : i64, tpu.core_type = #tpu.core_type<tc>, window_params = [{transform_indices = @transform_0, window_bounds = array<i64: 2, 128, 128>}, {pipeline_mode = #tpu.pipeline_mode<synchronous>, transform_indices = @transform_1, window_bounds = array<i64: 160, 128>}, {pipeline_mode = #tpu.pipeline_mode<synchronous>, transform_indices = @transform_2, window_bounds = array<i64: 160, 1>}, {transform_indices = @transform_3, window_bounds = array<i64: 1, 1>}, {transform_indices = @transform_4, window_bounds = array<i64: 2, 128, 128>}, {transform_indices = @transform_5, window_bounds = array<i64: 2, 128, 128>}]} {
    %c0 = arith.constant 0 : index
    %c0_0 = arith.constant 0 : index
    %0 = vector.load %arg2[%c0, %c0_0] : memref<160x128xf32, #tpu.memory_space<vmem>>, vector<160x128xf32>
    %c0_1 = arith.constant 0 : index
    %c0_2 = arith.constant 0 : index
    %1 = vector.load %arg3[%c0_1, %c0_2] : memref<160x1xf32, #tpu.memory_space<vmem>>, vector<160x1xf32>
    %c0_3 = arith.constant 0 : index
    %c0_4 = arith.constant 0 : index
    %2 = memref.load %arg4[%c0_3, %c0_4] : memref<1x1xf32, #tpu.memory_space<smem>>
    %c0_5 = arith.constant 0 : index
    %c0_6 = arith.constant 0 : index
    %c0_7 = arith.constant 0 : index
    %3 = vector.load %arg1[%c0_5, %c0_6, %c0_7] : memref<2x128x128xf32, #tpu.memory_space<vmem>>, vector<1x128x128xf32>
    %4 = vector.shape_cast %3 : vector<1x128x128xf32> to vector<128x128xf32>
    %cst = arith.constant dense<0.000000e+00> : vector<160x128xf32>
    %5 = tpu.matmul %0, %4, %cst {dimension_numbers = #tpu.dot_dimension_numbers<[1], [0], [0], [1], [0, 0, 1, 1], [], []>} : vector<160x128xf32>, vector<128x128xf32>, vector<160x128xf32> -> vector<160x128xf32>
    %6 = vector.broadcast %1 : vector<160x1xf32> to vector<160x128xf32>
    %7 = arith.addf %5, %6 : vector<160x128xf32>
    %8 = vector.extract_strided_slice %7 {offsets = [0, 0], sizes = [16, 128], strides = [1, 1]} : vector<160x128xf32> to vector<16x128xf32>
    %9 = vector.extract_strided_slice %7 {offsets = [16, 0], sizes = [16, 128], strides = [1, 1]} : vector<160x128xf32> to vector<16x128xf32>
    %10 = vector.extract_strided_slice %7 {offsets = [32, 0], sizes = [128, 128], strides = [1, 1]} : vector<160x128xf32> to vector<128x128xf32>
    %cst_8 = arith.constant dense<0.000000e+00> : vector<128x128xf32>
    %11 = tpu.matmul %8, %9, %cst_8 {dimension_numbers = #tpu.dot_dimension_numbers<[0], [0], [1], [1], [0, 1, 1, 1], [], []>} : vector<16x128xf32>, vector<16x128xf32>, vector<128x128xf32> -> vector<128x128xf32>
    %cst_9 = arith.constant dense<0xFF800000> : vector<128xf32>
    %12 = vector.multi_reduction <maximumf>, %11, %cst_9 [1] : vector<128x128xf32> to vector<128xf32>
    %13 = vector.shape_cast %12 : vector<128xf32> to vector<128x1xf32>
    %14 = vector.broadcast %13 : vector<128x1xf32> to vector<128x128xf32>
    %15 = arith.subf %11, %14 : vector<128x128xf32>
    %16 = math.exp %15 : vector<128x128xf32>
    %cst_10 = arith.constant dense<0.000000e+00> : vector<128xf32>
    %17 = vector.multi_reduction <add>, %16, %cst_10 [1] : vector<128x128xf32> to vector<128xf32>
    %18 = vector.shape_cast %17 : vector<128xf32> to vector<128x1xf32>
    %19 = tpu.reciprocal %18 : vector<128x1xf32> -> vector<128x1xf32>
    %20 = vector.broadcast %19 : vector<128x1xf32> to vector<128x128xf32>
    %21 = arith.mulf %16, %20 : vector<128x128xf32>
    %c0_11 = arith.constant 0 : index
    %c0_12 = arith.constant 0 : index
    %c0_13 = arith.constant 0 : index
    %22 = vector.load %arg6[%c0_11, %c0_12, %c0_13] : memref<2x128x128xf32, #tpu.memory_space<vmem>>, vector<1x128x128xf32>
    %23 = vector.shape_cast %22 : vector<1x128x128xf32> to vector<128x128xf32>
    %24 = vector.shape_cast %21 : vector<128x128xf32> to vector<1x128x128xf32>
    tpu.vector_store %arg6[%c0_11, %c0_12, %c0_13], %24 {strides = array<i32>} : memref<2x128x128xf32, #tpu.memory_space<vmem>>, vector<1x128x128xf32>,
    %cst_14 = arith.constant dense<0.000000e+00> : vector<128x128xf32>
    %25 = tpu.matmul %10, %21, %cst_14 {dimension_numbers = #tpu.dot_dimension_numbers<[1], [0], [0], [1], [0, 0, 1, 1], [], []>} : vector<128x128xf32>, vector<128x128xf32>, vector<128x128xf32> -> vector<128x128xf32>
    %26 = vector.broadcast %2 : f32 to vector<128x128xf32>
    %27 = arith.mulf %26, %25 : vector<128x128xf32>
    %28 = arith.addf %27, %4 : vector<128x128xf32>
    %c0_15 = arith.constant 0 : index
    %c0_16 = arith.constant 0 : index
    %c0_17 = arith.constant 0 : index
    %29 = vector.load %arg5[%c0_15, %c0_16, %c0_17] : memref<2x128x128xf32, #tpu.memory_space<vmem>>, vector<1x128x128xf32>
    %30 = vector.shape_cast %29 : vector<1x128x128xf32> to vector<128x128xf32>
    %31 = vector.shape_cast %28 : vector<128x128xf32> to vector<1x128x128xf32>
    tpu.vector_store %arg5[%c0_15, %c0_16, %c0_17], %31 {strides = array<i32>} : memref<2x128x128xf32, #tpu.memory_space<vmem>>, vector<1x128x128xf32>,
    %c1 = arith.constant 1 : index
    %c0_18 = arith.constant 0 : index
    %c0_19 = arith.constant 0 : index
    %32 = vector.load %arg1[%c1, %c0_18, %c0_19] : memref<2x128x128xf32, #tpu.memory_space<vmem>>, vector<1x128x128xf32>
    %33 = vector.shape_cast %32 : vector<1x128x128xf32> to vector<128x128xf32>
    %cst_20 = arith.constant dense<0.000000e+00> : vector<160x128xf32>
    %34 = tpu.matmul %0, %33, %cst_20 {dimension_numbers = #tpu.dot_dimension_numbers<[1], [0], [0], [1], [0, 0, 1, 1], [], []>} : vector<160x128xf32>, vector<128x128xf32>, vector<160x128xf32> -> vector<160x128xf32>
    %35 = vector.broadcast %1 : vector<160x1xf32> to vector<160x128xf32>
    %36 = arith.addf %34, %35 : vector<160x128xf32>
    %37 = vector.extract_strided_slice %36 {offsets = [0, 0], sizes = [16, 128], strides = [1, 1]} : vector<160x128xf32> to vector<16x128xf32>
    %38 = vector.extract_strided_slice %36 {offsets = [16, 0], sizes = [16, 128], strides = [1, 1]} : vector<160x128xf32> to vector<16x128xf32>
    %39 = vector.extract_strided_slice %36 {offsets = [32, 0], sizes = [128, 128], strides = [1, 1]} : vector<160x128xf32> to vector<128x128xf32>
    %cst_21 = arith.constant dense<0.000000e+00> : vector<128x128xf32>
    %40 = tpu.matmul %37, %38, %cst_21 {dimension_numbers = #tpu.dot_dimension_numbers<[0], [0], [1], [1], [0, 1, 1, 1], [], []>} : vector<16x128xf32>, vector<16x128xf32>, vector<128x128xf32> -> vector<128x128xf32>
    %cst_22 = arith.constant dense<0xFF800000> : vector<128xf32>
    %41 = vector.multi_reduction <maximumf>, %40, %cst_22 [1] : vector<128x128xf32> to vector<128xf32>
    %42 = vector.shape_cast %41 : vector<128xf32> to vector<128x1xf32>
    %43 = vector.broadcast %42 : vector<128x1xf32> to vector<128x128xf32>
    %44 = arith.subf %40, %43 : vector<128x128xf32>
    %45 = math.exp %44 : vector<128x128xf32>
    %cst_23 = arith.constant dense<0.000000e+00> : vector<128xf32>
    %46 = vector.multi_reduction <add>, %45, %cst_23 [1] : vector<128x128xf32> to vector<128xf32>
    %47 = vector.shape_cast %46 : vector<128xf32> to vector<128x1xf32>
    %48 = tpu.reciprocal %47 : vector<128x1xf32> -> vector<128x1xf32>
    %49 = vector.broadcast %48 : vector<128x1xf32> to vector<128x128xf32>
    %50 = arith.mulf %45, %49 : vector<128x128xf32>
    %c1_24 = arith.constant 1 : index
    %c0_25 = arith.constant 0 : index
    %c0_26 = arith.constant 0 : index
    %51 = vector.load %arg6[%c1_24, %c0_25, %c0_26] : memref<2x128x128xf32, #tpu.memory_space<vmem>>, vector<1x128x128xf32>
    %52 = vector.shape_cast %51 : vector<1x128x128xf32> to vector<128x128xf32>
    %53 = vector.shape_cast %50 : vector<128x128xf32> to vector<1x128x128xf32>
    tpu.vector_store %arg6[%c1_24, %c0_25, %c0_26], %53 {strides = array<i32>} : memref<2x128x128xf32, #tpu.memory_space<vmem>>, vector<1x128x128xf32>,
    %cst_27 = arith.constant dense<0.000000e+00> : vector<128x128xf32>
    %54 = tpu.matmul %39, %50, %cst_27 {dimension_numbers = #tpu.dot_dimension_numbers<[1], [0], [0], [1], [0, 0, 1, 1], [], []>} : vector<128x128xf32>, vector<128x128xf32>, vector<128x128xf32> -> vector<128x128xf32>
    %55 = vector.broadcast %2 : f32 to vector<128x128xf32>
    %56 = arith.mulf %55, %54 : vector<128x128xf32>
    %57 = arith.addf %56, %33 : vector<128x128xf32>
    %c1_28 = arith.constant 1 : index
    %c0_29 = arith.constant 0 : index
    %c0_30 = arith.constant 0 : index
    %58 = vector.load %arg5[%c1_28, %c0_29, %c0_30] : memref<2x128x128xf32, #tpu.memory_space<vmem>>, vector<1x128x128xf32>
    %59 = vector.shape_cast %58 : vector<1x128x128xf32> to vector<128x128xf32>
    %60 = vector.shape_cast %57 : vector<128x128xf32> to vector<1x128x128xf32>
    tpu.vector_store %arg5[%c1_28, %c0_29, %c0_30], %60 {strides = array<i32>} : memref<2x128x128xf32, #tpu.memory_space<vmem>>, vector<1x128x128xf32>,
    return
  }
  func.func @transform_0(%arg0: i32) -> (i32, i32, i32) {
    %c0_i32 = arith.constant 0 : i32
    %c0_i32_0 = arith.constant 0 : i32
    %c0_i32_1 = arith.constant 0 : i32
    return %arg0, %c0_i32, %c0_i32_0 : i32, i32, i32
  }
  func.func @transform_1(%arg0: i32) -> (i32, i32) {
    %c0_i32 = arith.constant 0 : i32
    %c0_i32_0 = arith.constant 0 : i32
    %c0_i32_1 = arith.constant 0 : i32
    return %c0_i32, %c0_i32_0 : i32, i32
  }
  func.func @transform_2(%arg0: i32) -> (i32, i32) {
    %c0_i32 = arith.constant 0 : i32
    %c0_i32_0 = arith.constant 0 : i32
    %c0_i32_1 = arith.constant 0 : i32
    return %c0_i32, %c0_i32_0 : i32, i32
  }
  func.func @transform_3(%arg0: i32) -> (i32, i32) {
    %c0_i32 = arith.constant 0 : i32
    %c0_i32_0 = arith.constant 0 : i32
    %c0_i32_1 = arith.constant 0 : i32
    return %c0_i32, %c0_i32_0 : i32, i32
  }
  func.func @transform_4(%arg0: i32) -> (i32, i32, i32) {
    %c0_i32 = arith.constant 0 : i32
    %c0_i32_0 = arith.constant 0 : i32
    %c0_i32_1 = arith.constant 0 : i32
    return %arg0, %c0_i32, %c0_i32_0 : i32, i32, i32
  }
  func.func @transform_5(%arg0: i32) -> (i32, i32, i32) {
    %c0_i32 = arith.constant 0 : i32
    %c0_i32_0 = arith.constant 0 : i32
    %c0_i32_1 = arith.constant 0 : i32
    return %arg0, %c0_i32, %c0_i32_0 : i32, i32, i32
  }
}

</mosaic_0001>

<llo_original>
// kernel: tpu_custom_call.1
$region0: #{tpu_custom_call.1}
  #allocation0 [shape = 'u32[]', space=smem, size = 0x4, offset = 0x4, fixed_abs, tag = 'smem constant byte address 0x4 - core index']
  #allocation1 [shape = 'u32[72,128]{1,0:T(1,128)}', space=vmem, size = 0x9000, scoped, tag = 'internal scratch']
  #allocation2 [shape = 'f32[1,1]{1,0:T(1,128)S(6)}', space=smem, size = 0x200, scoped, tag = 'scoped memory for tpu_custom_call.1']
  %s0 = inlined_call_operand.hbm [shape: f32[2,128,128], index: 0, kind: input, shape index: {}]
  %s1 = inlined_call_operand.vmem [shape: f32[160,128], index: 1, kind: input, shape index: {}]
  %s2 = inlined_call_operand.vmem [shape: f32[160,1], index: 2, kind: input, shape index: {}]
  %s3 = inlined_call_operand.<no memory space> [shape: f32[1,1], index: 3, kind: input, shape index: {}]
  %s4 = inlined_call_operand.hbm [shape: f32[2,128,128], index: 4, kind: output, shape index: {0}]
  %s5 = inlined_call_operand.hbm [shape: f32[2,128,128], index: 5, kind: output, shape index: {1}]
  %6 = xla_tuple %s4, %s5
  %s7 = sld [smem:[#allocation0]]
  $region38: #{tpu_custom_call.1} parent=0
    _
  %s9 = ssub.s32 1, %s7
  %s10 = scalar_select 0, %s9, %s7
  %11 = sst [smem:[#allocation2]] %s3
  $region1: #{tpu_custom_call.1} parent=0
    #allocation3 [shape = 'u8[131072]{0}', space=vmem, size = 0x20000, scoped, tag = 'input window, operand 0, single buffered']
    #allocation4 [shape = 's32[1]{0}', space=sflag, size = 0x4, scoped, tag = 'scoped memory for tpu_custom_call.1']
    #allocation5 [shape = 's32[1]{0}', space=sflag, size = 0x4, scoped, tag = 'scoped memory for tpu_custom_call.1']
    #allocation6 [shape = 'u8[131072]{0}', space=vmem, size = 0x20000, scoped, tag = 'output window, operand 0, single buffered']
    #allocation7 [shape = 'u8[131072]{0}', space=vmem, size = 0x20000, scoped, tag = 'output window, operand 1, single buffered']
    #allocation8 [shape = 's32[1]{0}', space=sflag, size = 0x4, scoped, tag = 'scoped memory for tpu_custom_call.1']
    %12 = vsyncpa [#allocation4], 0
    %13 = vsyncpa [#allocation5], 0
    %14 = vsyncpa [#allocation8], 0
    // Predicated region
    $region2: #{tpu_custom_call.1} parent=1 // pred_check
      _
    $region3: #{tpu_custom_call.1} parent=1 // pred_check_branch
      %16 = sbr.rel (0) target = $region5
    $region4: #{tpu_custom_call.1} parent=1 // pred_region
      %18 = vsyncadd [#allocation4], 0
      %s19 = sshll.u32 %s0, 4
      %s20 = int_to_ptr.hbm [resolvable:$true] %s19
      %s21 = sshll.u32 [#allocation3], 4
      %s22 = int_to_ptr.vmem [resolvable:$true] %s21
      %27 = dma.hbm_to_vmem [thread:$0]  %s20, 4096, %s22, [#allocation4], 128, 128, 8
    $region5: #{tpu_custom_call.1} parent=1 // pred_fallthru
      _
    // Predicated region
    $region6: #{tpu_custom_call.1} parent=1 // pred_check
      _
    $region7: #{tpu_custom_call.1} parent=1 // pred_check_branch
      %29 = sbr.rel (0) target = $region9
    $region8: #{tpu_custom_call.1} parent=1 // pred_region
      _
    $region9: #{tpu_custom_call.1} parent=1 // pred_fallthru
      _
    // Predicated region
    $region10: #{tpu_custom_call.1} parent=1 // pred_check
      _
    $region11: #{tpu_custom_call.1} parent=1 // pred_check_branch
      %31 = sbr.rel (0) target = $region13
    $region12: #{tpu_custom_call.1} parent=1 // pred_region
      _
    $region13: #{tpu_custom_call.1} parent=1 // pred_fallthru
      _
    // Predicated region
    $region14: #{tpu_custom_call.1} parent=1 // pred_check
      _
    $region15: #{tpu_custom_call.1} parent=1 // pred_check_branch
      %33 = sbr.rel (0) target = $region17
    $region16: #{tpu_custom_call.1} parent=1 // pred_region
      _
    $region17: #{tpu_custom_call.1} parent=1 // pred_fallthru
      _
    // Predicated region
    $region18: #{tpu_custom_call.1} parent=1 // pred_check
      _
    $region19: #{tpu_custom_call.1} parent=1 // pred_check_branch
      %35 = sbr.rel (0) target = $region21
    $region20: #{tpu_custom_call.1} parent=1 // pred_region
      %37 = dma.done [#allocation4], 4096
    $region21: #{tpu_custom_call.1} parent=1 // pred_fallthru
      _
    %v38 = vld [vmem:[%s1] sm:$0xff]
    %v39 = vld [vmem:[%s1 + $0x8] sm:$0xff]
    %v40 = vld [vmem:[%s1 + $0x10] sm:$0xff]
    %v41 = vld [vmem:[%s1 + $0x18] sm:$0xff]
    %v42 = vld [vmem:[%s1 + $0x20] sm:$0xff]
    %v43 = vld [vmem:[%s1 + $0x28] sm:$0xff]
    %v44 = vld [vmem:[%s1 + $0x30] sm:$0xff]
    %v45 = vld [vmem:[%s1 + $0x38] sm:$0xff]
    %v46 = vld [vmem:[%s1 + $0x40] sm:$0xff]
    %v47 = vld [vmem:[%s1 + $0x48] sm:$0xff]
    %v48 = vld [vmem:[%s1 + $0x50] sm:$0xff]
    %v49 = vld [vmem:[%s1 + $0x58] sm:$0xff]
    %v50 = vld [vmem:[%s1 + $0x60] sm:$0xff]
    %v51 = vld [vmem:[%s1 + $0x68] sm:$0xff]
    %v52 = vld [vmem:[%s1 + $0x70] sm:$0xff]
    %v53 = vld [vmem:[%s1 + $0x78] sm:$0xff]
    %v54 = vld [vmem:[%s1 + $0x80] sm:$0xff]
    %v55 = vld [vmem:[%s1 + $0x88] sm:$0xff]
    %v56 = vld [vmem:[%s1 + $0x90] sm:$0xff]
    %v57 = vld [vmem:[%s1 + $0x98] sm:$0xff]
    %v58 = vld [vmem:[%s2] sm:$0xff]
    %v59 = vld [vmem:[%s2 + $0x8] sm:$0xff]
    %v60 = vld [vmem:[%s2 + $0x10] sm:$0xff]
    %v61 = vld [vmem:[%s2 + $0x18] sm:$0xff]
    %v62 = vld [vmem:[%s2 + $0x20] sm:$0xff]
    %v63 = vld [vmem:[%s2 + $0x28] sm:$0xff]
    %v64 = vld [vmem:[%s2 + $0x30] sm:$0xff]
    %v65 = vld [vmem:[%s2 + $0x38] sm:$0xff]
    %v66 = vld [vmem:[%s2 + $0x40] sm:$0xff]
    %v67 = vld [vmem:[%s2 + $0x48] sm:$0xff]
    %v68 = vld [vmem:[%s2 + $0x50] sm:$0xff]
    %v69 = vld [vmem:[%s2 + $0x58] sm:$0xff]
    %v70 = vld [vmem:[%s2 + $0x60] sm:$0xff]
    %v71 = vld [vmem:[%s2 + $0x68] sm:$0xff]
    %v72 = vld [vmem:[%s2 + $0x70] sm:$0xff]
    %v73 = vld [vmem:[%s2 + $0x78] sm:$0xff]
    %v74 = vld [vmem:[%s2 + $0x80] sm:$0xff]
    %v75 = vld [vmem:[%s2 + $0x88] sm:$0xff]
    %v76 = vld [vmem:[%s2 + $0x90] sm:$0xff]
    %v77 = vld [vmem:[%s2 + $0x98] sm:$0xff]
    %s78 = sld [smem:[#allocation2]]
    %v79 = vld [vmem:[#allocation3] sm:$0xff]
    %v80 = vld [vmem:[#allocation3 + $0x8] sm:$0xff]
    %v81 = vld [vmem:[#allocation3 + $0x10] sm:$0xff]
    %v82 = vld [vmem:[#allocation3 + $0x18] sm:$0xff]
    %v83 = vld [vmem:[#allocation3 + $0x20] sm:$0xff]
    %v84 = vld [vmem:[#allocation3 + $0x28] sm:$0xff]
    %v85 = vld [vmem:[#allocation3 + $0x30] sm:$0xff]
    %v86 = vld [vmem:[#allocation3 + $0x38] sm:$0xff]
    %v87 = vld [vmem:[#allocation3 + $0x40] sm:$0xff]
    %v88 = vld [vmem:[#allocation3 + $0x48] sm:$0xff]
    %v89 = vld [vmem:[#allocation3 + $0x50] sm:$0xff]
    %v90 = vld [vmem:[#allocation3 + $0x58] sm:$0xff]
    %v91 = vld [vmem:[#allocation3 + $0x60] sm:$0xff]
    %v92 = vld [vmem:[#allocation3 + $0x68] sm:$0xff]
    %v93 = vld [vmem:[#allocation3 + $0x70] sm:$0xff]
    %v94 = vld [vmem:[#allocation3 + $0x78] sm:$0xff]
    %96 = vset.pattern.permute.xlu0 0
    %97 = vperm.xlu0 %96, %v58
    %v98 = vpop.permute.xlu0 %97
    %101 = vset.pattern.permute.xlu0 0
    %102 = vperm.xlu0 %101, %v59
    %v103 = vpop.permute.xlu0 %102
    %106 = vset.pattern.permute.xlu0 0
    %107 = vperm.xlu0 %106, %v60
    %v108 = vpop.permute.xlu0 %107
    %111 = vset.pattern.permute.xlu0 0
    %112 = vperm.xlu0 %111, %v61
    %v113 = vpop.permute.xlu0 %112
    %116 = vset.pattern.permute.xlu0 0
    %117 = vperm.xlu0 %116, %v62
    %v118 = vpop.permute.xlu0 %117
    %121 = vset.pattern.permute.xlu0 0
    %122 = vperm.xlu0 %121, %v63
    %v123 = vpop.permute.xlu0 %122
    %126 = vset.pattern.permute.xlu0 0
    %127 = vperm.xlu0 %126, %v64
    %v128 = vpop.permute.xlu0 %127
    %131 = vset.pattern.permute.xlu0 0
    %132 = vperm.xlu0 %131, %v65
    %v133 = vpop.permute.xlu0 %132
    %136 = vset.pattern.permute.xlu0 0
    %137 = vperm.xlu0 %136, %v66
    %v138 = vpop.permute.xlu0 %137
    %141 = vset.pattern.permute.xlu0 0
    %142 = vperm.xlu0 %141, %v67
    %v143 = vpop.permute.xlu0 %142
    %146 = vset.pattern.permute.xlu0 0
    %147 = vperm.xlu0 %146, %v68
    %v148 = vpop.permute.xlu0 %147
    %151 = vset.pattern.permute.xlu0 0
    %152 = vperm.xlu0 %151, %v69
    %v153 = vpop.permute.xlu0 %152
    %156 = vset.pattern.permute.xlu0 0
    %157 = vperm.xlu0 %156, %v70
    %v158 = vpop.permute.xlu0 %157
    %161 = vset.pattern.permute.xlu0 0
    %162 = vperm.xlu0 %161, %v71
    %v163 = vpop.permute.xlu0 %162
    %166 = vset.pattern.permute.xlu0 0
    %167 = vperm.xlu0 %166, %v72
    %v168 = vpop.permute.xlu0 %167
    %171 = vset.pattern.permute.xlu0 0
    %172 = vperm.xlu0 %171, %v73
    %v173 = vpop.permute.xlu0 %172
    %176 = vset.pattern.permute.xlu0 0
    %177 = vperm.xlu0 %176, %v74
    %v178 = vpop.permute.xlu0 %177
    %181 = vset.pattern.permute.xlu0 0
    %182 = vperm.xlu0 %181, %v75
    %v183 = vpop.permute.xlu0 %182
    %186 = vset.pattern.permute.xlu0 0
    %187 = vperm.xlu0 %186, %v76
    %v188 = vpop.permute.xlu0 %187
    %191 = vset.pattern.permute.xlu0 0
    %192 = vperm.xlu0 %191, %v77
    %v193 = vpop.permute.xlu0 %192
    %195 = vmatpush.msra.mxu0 %v94
    %196 = vmatpush.msra.mxu0 %v93
    %197 = vmatpush.msra.mxu0 %v92
    %198 = vmatpush.msra.mxu0 %v91
    %199 = vmatpush.msra.mxu0 %v90
    %200 = vmatpush.msra.mxu0 %v89
    %201 = vmatpush.msra.mxu0 %v88
    %202 = vmatpush.msra.mxu0 %v87
    %203 = vmatpush.msra.mxu0 %v86
    %204 = vmatpush.msra.mxu0 %v85
    %205 = vmatpush.msra.mxu0 %v84
    %206 = vmatpush.msra.mxu0 %v83
    %207 = vmatpush.msra.mxu0 %v82
    %208 = vmatpush.msra.mxu0 %v81
    %209 = vmatpush.msra.mxu0 %v80
    %210 = vmatpush.msra.mxu0 %v79
    %211 = vmatmul.f32.gmra.mxu0 %v38
    %v212 = vpop.f32.mrf.mxu0
    %v213 = vadd.f32 %v98, %v212
    %214 = vmatmul.f32.gmra.mxu0 %v39
    %v215 = vpop.f32.mrf.mxu0
    %v216 = vadd.f32 %v103, %v215
    %217 = vmatmul.f32.gmra.mxu0 %v40
    %v218 = vpop.f32.mrf.mxu0
    %v219 = vadd.f32 %v108, %v218
    %220 = vmatmul.f32.gmra.mxu0 %v41
    %v221 = vpop.f32.mrf.mxu0
    %v222 = vadd.f32 %v113, %v221
    %223 = vmatmul.f32.gmra.mxu0 %v42
    %v224 = vpop.f32.mrf.mxu0
    %v225 = vadd.f32 %v118, %v224
    %226 = vmatmul.f32.gmra.mxu0 %v43
    %v227 = vpop.f32.mrf.mxu0
    %v228 = vadd.f32 %v123, %v227
    %229 = vmatmul.f32.gmra.mxu0 %v44
    %v230 = vpop.f32.mrf.mxu0
    %v231 = vadd.f32 %v128, %v230
    %232 = vmatmul.f32.gmra.mxu0 %v45
    %v233 = vpop.f32.mrf.mxu0
    %v234 = vadd.f32 %v133, %v233
    %235 = vmatmul.f32.gmra.mxu0 %v46
    %v236 = vpop.f32.mrf.mxu0
    %v237 = vadd.f32 %v138, %v236
    %238 = vmatmul.f32.gmra.mxu0 %v47
    %v239 = vpop.f32.mrf.mxu0
    %v240 = vadd.f32 %v143, %v239
    %241 = vmatmul.f32.gmra.mxu0 %v48
    %v242 = vpop.f32.mrf.mxu0
    %v243 = vadd.f32 %v148, %v242
    %244 = vmatmul.f32.gmra.mxu0 %v49
    %v245 = vpop.f32.mrf.mxu0
    %v246 = vadd.f32 %v153, %v245
    %247 = vmatmul.f32.gmra.mxu0 %v50
    %v248 = vpop.f32.mrf.mxu0
    %v249 = vadd.f32 %v158, %v248
    %250 = vmatmul.f32.gmra.mxu0 %v51
    %v251 = vpop.f32.mrf.mxu0
    %v252 = vadd.f32 %v163, %v251
    %253 = vmatmul.f32.gmra.mxu0 %v52
    %v254 = vpop.f32.mrf.mxu0
    %v255 = vadd.f32 %v168, %v254
    %256 = vmatmul.f32.gmra.mxu0 %v53
    %v257 = vpop.f32.mrf.mxu0
    %v258 = vadd.f32 %v173, %v257
    %259 = vmatmul.f32.gmra.mxu0 %v54
    %v260 = vpop.f32.mrf.mxu0
    %v261 = vadd.f32 %v178, %v260
    %262 = vmatmul.f32.gmra.mxu0 %v55
    %v263 = vpop.f32.mrf.mxu0
    %v264 = vadd.f32 %v183, %v263
    %265 = vmatmul.f32.gmra.mxu0 %v56
    %v266 = vpop.f32.mrf.mxu0
    %v267 = vadd.f32 %v188, %v266
    %268 = vmatmul.f32.gmra.mxu0 %v57
    %v269 = vpop.f32.mrf.mxu0
    %v270 = vadd.f32 %v193, %v269
    %271 = vdwg.mxu0
    %272 = vxpose.xlu0.b32.start [1/16] %v213, 128
    %273 = vxpose.xlu0.b32.cont [2/16] %v216, 128
    %274 = vxpose.xlu0.b32.cont [3/16] 0.0, 128
    %275 = vxpose.xlu0.b32.cont [4/16] 0.0, 128
    %276 = vxpose.xlu0.b32.cont [5/16] 0.0, 128
    %277 = vxpose.xlu0.b32.cont [6/16] 0.0, 128
    %278 = vxpose.xlu0.b32.cont [7/16] 0.0, 128
    %279 = vxpose.xlu0.b32.cont [8/16] 0.0, 128
    %280 = vxpose.xlu0.b32.cont [9/16] 0.0, 128
    %281 = vxpose.xlu0.b32.cont [10/16] 0.0, 128
    %282 = vxpose.xlu0.b32.cont [11/16] 0.0, 128
    %283 = vxpose.xlu0.b32.cont [12/16] 0.0, 128
    %284 = vxpose.xlu0.b32.cont [13/16] 0.0, 128
    %285 = vxpose.xlu0.b32.cont [14/16] 0.0, 128
    %286 = vxpose.xlu0.b32.cont [15/16] 0.0, 128
    %287 = vxpose.xlu0.b32.end [16/16] 0.0, 128
    %v288 = vpop.trf.xlu0
    %v289 = vpop.trf.xlu0
    %v290 = vpop.trf.xlu0
    %v291 = vpop.trf.xlu0
    %v292 = vpop.trf.xlu0
    %v293 = vpop.trf.xlu0
    %v294 = vpop.trf.xlu0
    %v295 = vpop.trf.xlu0
    %v296 = vpop.trf.xlu0
    %v297 = vpop.trf.xlu0
    %v298 = vpop.trf.xlu0
    %v299 = vpop.trf.xlu0
    %v300 = vpop.trf.xlu0
    %v301 = vpop.trf.xlu0
    %v302 = vpop.trf.xlu0
    %v303 = vpop.trf.xlu0
    %vm304 = vcmask 130048
    %v306 = vsel %vm304, %v288, 0
    %v309 = vsel %vm304, %v289, 0
    %v312 = vsel %vm304, %v290, 0
    %v315 = vsel %vm304, %v291, 0
    %v318 = vsel %vm304, %v292, 0
    %v321 = vsel %vm304, %v293, 0
    %v324 = vsel %vm304, %v294, 0
    %v327 = vsel %vm304, %v295, 0
    %v330 = vsel %vm304, %v296, 0
    %v333 = vsel %vm304, %v297, 0
    %v336 = vsel %vm304, %v298, 0
    %v339 = vsel %vm304, %v299, 0
    %v342 = vsel %vm304, %v300, 0
    %v345 = vsel %vm304, %v301, 0
    %v348 = vsel %vm304, %v302, 0
    %v351 = vsel %vm304, %v303, 0
    %353 = vmatpush.msra.mxu0 0.0
    %354 = vmatpush.msra.mxu0 0.0
    %355 = vmatpush.msra.mxu0 0.0
    %356 = vmatpush.msra.mxu0 0.0
    %357 = vmatpush.msra.mxu0 0.0
    %358 = vmatpush.msra.mxu0 0.0
    %359 = vmatpush.msra.mxu0 0.0
    %360 = vmatpush.msra.mxu0 0.0
    %361 = vmatpush.msra.mxu0 0.0
    %362 = vmatpush.msra.mxu0 0.0
    %363 = vmatpush.msra.mxu0 0.0
    %364 = vmatpush.msra.mxu0 0.0
    %365 = vmatpush.msra.mxu0 0.0
    %366 = vmatpush.msra.mxu0 0.0
    %367 = vmatpush.msra.mxu0 %v222
    %368 = vmatpush.msra.mxu0 %v219
    %369 = vmatmul.f32.gmra.mxu0 %v306
    %v370 = vpop.f32.mrf.mxu0
    %v371 = vadd.f32 0.0, %v370
    %372 = vmatmul.f32.gmra.mxu0 %v309
    %v373 = vpop.f32.mrf.mxu0
    %v374 = vadd.f32 0.0, %v373
    %375 = vmatmul.f32.gmra.mxu0 %v312
    %v376 = vpop.f32.mrf.mxu0
    %v377 = vadd.f32 0.0, %v376
    %378 = vmatmul.f32.gmra.mxu0 %v315
    %v379 = vpop.f32.mrf.mxu0
    %v380 = vadd.f32 0.0, %v379
    %381 = vmatmul.f32.gmra.mxu0 %v318
    %v382 = vpop.f32.mrf.mxu0
    %v383 = vadd.f32 0.0, %v382
    %384 = vmatmul.f32.gmra.mxu0 %v321
    %v385 = vpop.f32.mrf.mxu0
    %v386 = vadd.f32 0.0, %v385
    %387 = vmatmul.f32.gmra.mxu0 %v324
    %v388 = vpop.f32.mrf.mxu0
    %v389 = vadd.f32 0.0, %v388
    %390 = vmatmul.f32.gmra.mxu0 %v327
    %v391 = vpop.f32.mrf.mxu0
    %v392 = vadd.f32 0.0, %v391
    %393 = vmatmul.f32.gmra.mxu0 %v330
    %v394 = vpop.f32.mrf.mxu0
    %v395 = vadd.f32 0.0, %v394
    %396 = vmatmul.f32.gmra.mxu0 %v333
    %v397 = vpop.f32.mrf.mxu0
    %v398 = vadd.f32 0.0, %v397
    %399 = vmatmul.f32.gmra.mxu0 %v336
    %v400 = vpop.f32.mrf.mxu0
    %v401 = vadd.f32 0.0, %v400
    %402 = vmatmul.f32.gmra.mxu0 %v339
    %v403 = vpop.f32.mrf.mxu0
    %v404 = vadd.f32 0.0, %v403
    %405 = vmatmul.f32.gmra.mxu0 %v342
    %v406 = vpop.f32.mrf.mxu0
    %v407 = vadd.f32 0.0, %v406
    %408 = vmatmul.f32.gmra.mxu0 %v345
    %v409 = vpop.f32.mrf.mxu0
    %v410 = vadd.f32 0.0, %v409
    %411 = vmatmul.f32.gmra.mxu0 %v348
    %v412 = vpop.f32.mrf.mxu0
    %v413 = vadd.f32 0.0, %v412
    %414 = vmatmul.f32.gmra.mxu0 %v351
    %v415 = vpop.f32.mrf.mxu0
    %v416 = vadd.f32 0.0, %v415
    %417 = vdwg.mxu0
    %418 = vmax.xlane.f32.xlu0 %v371
    %v419 = vpop.xlane.xlu0 %418
    %420 = vmax.xlane.f32.xlu0 %v374
    %v421 = vpop.xlane.xlu0 %420
    %422 = vmax.xlane.f32.xlu0 %v377
    %v423 = vpop.xlane.xlu0 %422
    %424 = vmax.xlane.f32.xlu0 %v380
    %v425 = vpop.xlane.xlu0 %424
    %426 = vmax.xlane.f32.xlu0 %v383
    %v427 = vpop.xlane.xlu0 %426
    %428 = vmax.xlane.f32.xlu0 %v386
    %v429 = vpop.xlane.xlu0 %428
    %430 = vmax.xlane.f32.xlu0 %v389
    %v431 = vpop.xlane.xlu0 %430
    %432 = vmax.xlane.f32.xlu0 %v392
    %v433 = vpop.xlane.xlu0 %432
    %434 = vmax.xlane.f32.xlu0 %v395
    %v435 = vpop.xlane.xlu0 %434
    %436 = vmax.xlane.f32.xlu0 %v398
    %v437 = vpop.xlane.xlu0 %436
    %438 = vmax.xlane.f32.xlu0 %v401
    %v439 = vpop.xlane.xlu0 %438
    %440 = vmax.xlane.f32.xlu0 %v404
    %v441 = vpop.xlane.xlu0 %440
    %442 = vmax.xlane.f32.xlu0 %v407
    %v443 = vpop.xlane.xlu0 %442
    %444 = vmax.xlane.f32.xlu0 %v410
    %v445 = vpop.xlane.xlu0 %444
    %446 = vmax.xlane.f32.xlu0 %v413
    %v447 = vpop.xlane.xlu0 %446
    %448 = vmax.xlane.f32.xlu0 %v416
    %v449 = vpop.xlane.xlu0 %448
    %v450 = vsub.f32 %v371, %v419
    %v451 = vsub.f32 %v374, %v421
    %v452 = vsub.f32 %v377, %v423
    %v453 = vsub.f32 %v380, %v425
    %v454 = vsub.f32 %v383, %v427
    %v455 = vsub.f32 %v386, %v429
    %v456 = vsub.f32 %v389, %v431
    %v457 = vsub.f32 %v392, %v433
    %v458 = vsub.f32 %v395, %v435
    %v459 = vsub.f32 %v398, %v437
    %v460 = vsub.f32 %v401, %v439
    %v461 = vsub.f32 %v404, %v441
    %v462 = vsub.f32 %v407, %v443
    %v463 = vsub.f32 %v410, %v445
    %v464 = vsub.f32 %v413, %v447
    %v465 = vsub.f32 %v416, %v449
    %v466 = vmul.f32 %v450, 1.442695
    %v467 = vpow.pop %v466
    %v468 = vmul.f32 %v451, 1.442695
    %v469 = vpow.pop %v468
    %v470 = vmul.f32 %v452, 1.442695
    %v471 = vpow.pop %v470
    %v472 = vmul.f32 %v453, 1.442695
    %v473 = vpow.pop %v472
    %v474 = vmul.f32 %v454, 1.442695
    %v475 = vpow.pop %v474
    %v476 = vmul.f32 %v455, 1.442695
    %v477 = vpow.pop %v476
    %v478 = vmul.f32 %v456, 1.442695
    %v479 = vpow.pop %v478
    %v480 = vmul.f32 %v457, 1.442695
    %v481 = vpow.pop %v480
    %v482 = vmul.f32 %v458, 1.442695
    %v483 = vpow.pop %v482
    %v484 = vmul.f32 %v459, 1.442695
    %v485 = vpow.pop %v484
    %v486 = vmul.f32 %v460, 1.442695
    %v487 = vpow.pop %v486
    %v488 = vmul.f32 %v461, 1.442695
    %v489 = vpow.pop %v488
    %v490 = vmul.f32 %v462, 1.442695
    %v491 = vpow.pop %v490
    %v492 = vmul.f32 %v463, 1.442695
    %v493 = vpow.pop %v492
    %v494 = vmul.f32 %v464, 1.442695
    %v495 = vpow.pop %v494
    %v496 = vmul.f32 %v465, 1.442695
    %v497 = vpow.pop %v496
    %498 = vadd.xlane.f32.xlu0 %v467
    %v499 = vpop.xlane.xlu0 %498
    %500 = vadd.xlane.f32.xlu0 %v469
    %v501 = vpop.xlane.xlu0 %500
    %502 = vadd.xlane.f32.xlu0 %v471
    %v503 = vpop.xlane.xlu0 %502
    %504 = vadd.xlane.f32.xlu0 %v473
    %v505 = vpop.xlane.xlu0 %504
    %506 = vadd.xlane.f32.xlu0 %v475
    %v507 = vpop.xlane.xlu0 %506
    %508 = vadd.xlane.f32.xlu0 %v477
    %v509 = vpop.xlane.xlu0 %508
    %510 = vadd.xlane.f32.xlu0 %v479
    %v511 = vpop.xlane.xlu0 %510
    %512 = vadd.xlane.f32.xlu0 %v481
    %v513 = vpop.xlane.xlu0 %512
    %514 = vadd.xlane.f32.xlu0 %v483
    %v515 = vpop.xlane.xlu0 %514
    %516 = vadd.xlane.f32.xlu0 %v485
    %v517 = vpop.xlane.xlu0 %516
    %518 = vadd.xlane.f32.xlu0 %v487
    %v519 = vpop.xlane.xlu0 %518
    %520 = vadd.xlane.f32.xlu0 %v489
    %v521 = vpop.xlane.xlu0 %520
    %522 = vadd.xlane.f32.xlu0 %v491
    %v523 = vpop.xlane.xlu0 %522
    %524 = vadd.xlane.f32.xlu0 %v493
    %v525 = vpop.xlane.xlu0 %524
    %526 = vadd.xlane.f32.xlu0 %v495
    %v527 = vpop.xlane.xlu0 %526
    %528 = vadd.xlane.f32.xlu0 %v497
    %v529 = vpop.xlane.xlu0 %528
    %v530 = vrcp.pop %v499
    %v531 = vmul.f32 %v499, %v530
    %v532 = vsub.f32 1.0, %v531
    %v533 = vmul.f32 %v530, %v532
    %v534 = vadd.f32 %v530, %v533
    %vm535 = vweird.f32 %v499
    %vm536 = vweird.f32 %v530
    %vm537 = vmor %vm535, %vm536
    %v538 = vsel %vm537, %v530, %v534
    %v539 = vand.u32 2147483647, %v499
    %vm540 = vcmp.eq.f32.partialorder %v539, 8.507059e+37
    %v541 = vand.u32 %v499, 2147483648
    %v542 = vor.u32 1.1754944e-38, %v541
    %v543 = vsel %vm540, %v542, %v538
    %v544 = vrcp.pop %v501
    %v545 = vmul.f32 %v501, %v544
    %v546 = vsub.f32 1.0, %v545
    %v547 = vmul.f32 %v544, %v546
    %v548 = vadd.f32 %v544, %v547
    %vm549 = vweird.f32 %v501
    %vm550 = vweird.f32 %v544
    %vm551 = vmor %vm549, %vm550
    %v552 = vsel %vm551, %v544, %v548
    %v553 = vand.u32 2147483647, %v501
    %vm554 = vcmp.eq.f32.partialorder %v553, 8.507059e+37
    %v555 = vand.u32 %v501, 2147483648
    %v556 = vor.u32 1.1754944e-38, %v555
    %v557 = vsel %vm554, %v556, %v552
    %v558 = vrcp.pop %v503
    %v559 = vmul.f32 %v503, %v558
    %v560 = vsub.f32 1.0, %v559
    %v561 = vmul.f32 %v558, %v560
    %v562 = vadd.f32 %v558, %v561
    %vm563 = vweird.f32 %v503
    %vm564 = vweird.f32 %v558
    %vm565 = vmor %vm563, %vm564
    %v566 = vsel %vm565, %v558, %v562
    %v567 = vand.u32 2147483647, %v503
    %vm568 = vcmp.eq.f32.partialorder %v567, 8.507059e+37
    %v569 = vand.u32 %v503, 2147483648
    %v570 = vor.u32 1.1754944e-38, %v569
    %v571 = vsel %vm568, %v570, %v566
    %v572 = vrcp.pop %v505
    %v573 = vmul.f32 %v505, %v572
    %v574 = vsub.f32 1.0, %v573
    %v575 = vmul.f32 %v572, %v574
    %v576 = vadd.f32 %v572, %v575
    %vm577 = vweird.f32 %v505
    %vm578 = vweird.f32 %v572
    %vm579 = vmor %vm577, %vm578
    %v580 = vsel %vm579, %v572, %v576
    %v581 = vand.u32 2147483647, %v505
    %vm582 = vcmp.eq.f32.partialorder %v581, 8.507059e+37
    %v583 = vand.u32 %v505, 2147483648
    %v584 = vor.u32 1.1754944e-38, %v583
    %v585 = vsel %vm582, %v584, %v580
    %v586 = vrcp.pop %v507
    %v587 = vmul.f32 %v507, %v586
    %v588 = vsub.f32 1.0, %v587
    %v589 = vmul.f32 %v586, %v588
    %v590 = vadd.f32 %v586, %v589
    %vm591 = vweird.f32 %v507
    %vm592 = vweird.f32 %v586
    %vm593 = vmor %vm591, %vm592
    %v594 = vsel %vm593, %v586, %v590
    %v595 = vand.u32 2147483647, %v507
    %vm596 = vcmp.eq.f32.partialorder %v595, 8.507059e+37
    %v597 = vand.u32 %v507, 2147483648
    %v598 = vor.u32 1.1754944e-38, %v597
    %v599 = vsel %vm596, %v598, %v594
    %v600 = vrcp.pop %v509
    %v601 = vmul.f32 %v509, %v600
    %v602 = vsub.f32 1.0, %v601
    %v603 = vmul.f32 %v600, %v602
    %v604 = vadd.f32 %v600, %v603
    %vm605 = vweird.f32 %v509
    %vm606 = vweird.f32 %v600
    %vm607 = vmor %vm605, %vm606
    %v608 = vsel %vm607, %v600, %v604
    %v609 = vand.u32 2147483647, %v509
    %vm610 = vcmp.eq.f32.partialorder %v609, 8.507059e+37
    %v611 = vand.u32 %v509, 2147483648
    %v612 = vor.u32 1.1754944e-38, %v611
    %v613 = vsel %vm610, %v612, %v608
    %v614 = vrcp.pop %v511
    %v615 = vmul.f32 %v511, %v614
    %v616 = vsub.f32 1.0, %v615
    %v617 = vmul.f32 %v614, %v616
    %v618 = vadd.f32 %v614, %v617
    %vm619 = vweird.f32 %v511
    %vm620 = vweird.f32 %v614
    %vm621 = vmor %vm619, %vm620
    %v622 = vsel %vm621, %v614, %v618
    %v623 = vand.u32 2147483647, %v511
    %vm624 = vcmp.eq.f32.partialorder %v623, 8.507059e+37
    %v625 = vand.u32 %v511, 2147483648
    %v626 = vor.u32 1.1754944e-38, %v625
    %v627 = vsel %vm624, %v626, %v622
    %v628 = vrcp.pop %v513
    %v629 = vmul.f32 %v513, %v628
    %v630 = vsub.f32 1.0, %v629
    %v631 = vmul.f32 %v628, %v630
    %v632 = vadd.f32 %v628, %v631
    %vm633 = vweird.f32 %v513
    %vm634 = vweird.f32 %v628
    %vm635 = vmor %vm633, %vm634
    %v636 = vsel %vm635, %v628, %v632
    %v637 = vand.u32 2147483647, %v513
    %vm638 = vcmp.eq.f32.partialorder %v637, 8.507059e+37
    %v639 = vand.u32 %v513, 2147483648
    %v640 = vor.u32 1.1754944e-38, %v639
    %v641 = vsel %vm638, %v640, %v636
    %v642 = vrcp.pop %v515
    %v643 = vmul.f32 %v515, %v642
    %v644 = vsub.f32 1.0, %v643
    %v645 = vmul.f32 %v642, %v644
    %v646 = vadd.f32 %v642, %v645
    %vm647 = vweird.f32 %v515
    %vm648 = vweird.f32 %v642
    %vm649 = vmor %vm647, %vm648
    %v650 = vsel %vm649, %v642, %v646
    %v651 = vand.u32 2147483647, %v515
    %vm652 = vcmp.eq.f32.partialorder %v651, 8.507059e+37
    %v653 = vand.u32 %v515, 2147483648
    %v654 = vor.u32 1.1754944e-38, %v653
    %v655 = vsel %vm652, %v654, %v650
    %v656 = vrcp.pop %v517
    %v657 = vmul.f32 %v517, %v656
    %v658 = vsub.f32 1.0, %v657
    %v659 = vmul.f32 %v656, %v658
    %v660 = vadd.f32 %v656, %v659
    %vm661 = vweird.f32 %v517
    %vm662 = vweird.f32 %v656
    %vm663 = vmor %vm661, %vm662
    %v664 = vsel %vm663, %v656, %v660
    %v665 = vand.u32 2147483647, %v517
    %vm666 = vcmp.eq.f32.partialorder %v665, 8.507059e+37
    %v667 = vand.u32 %v517, 2147483648
    %v668 = vor.u32 1.1754944e-38, %v667
    %v669 = vsel %vm666, %v668, %v664
    %v670 = vrcp.pop %v519
    %v671 = vmul.f32 %v519, %v670
    %v672 = vsub.f32 1.0, %v671
    %v673 = vmul.f32 %v670, %v672
    %v674 = vadd.f32 %v670, %v673
    %vm675 = vweird.f32 %v519
    %vm676 = vweird.f32 %v670
    %vm677 = vmor %vm675, %vm676
    %v678 = vsel %vm677, %v670, %v674
    %v679 = vand.u32 2147483647, %v519
    %vm680 = vcmp.eq.f32.partialorder %v679, 8.507059e+37
    %v681 = vand.u32 %v519, 2147483648
    %v682 = vor.u32 1.1754944e-38, %v681
    %v683 = vsel %vm680, %v682, %v678
    %v684 = vrcp.pop %v521
    %v685 = vmul.f32 %v521, %v684
    %v686 = vsub.f32 1.0, %v685
    %v687 = vmul.f32 %v684, %v686
    %v688 = vadd.f32 %v684, %v687
    %vm689 = vweird.f32 %v521
    %vm690 = vweird.f32 %v684
    %vm691 = vmor %vm689, %vm690
    %v692 = vsel %vm691, %v684, %v688
    %v693 = vand.u32 2147483647, %v521
    %vm694 = vcmp.eq.f32.partialorder %v693, 8.507059e+37
    %v695 = vand.u32 %v521, 2147483648
    %v696 = vor.u32 1.1754944e-38, %v695
    %v697 = vsel %vm694, %v696, %v692
    %v698 = vrcp.pop %v523
    %v699 = vmul.f32 %v523, %v698
    %v700 = vsub.f32 1.0, %v699
    %v701 = vmul.f32 %v698, %v700
    %v702 = vadd.f32 %v698, %v701
    %vm703 = vweird.f32 %v523
    %vm704 = vweird.f32 %v698
    %vm705 = vmor %vm703, %vm704
    %v706 = vsel %vm705, %v698, %v702
    %v707 = vand.u32 2147483647, %v523
    %vm708 = vcmp.eq.f32.partialorder %v707, 8.507059e+37
    %v709 = vand.u32 %v523, 2147483648
    %v710 = vor.u32 1.1754944e-38, %v709
    %v711 = vsel %vm708, %v710, %v706
    %v712 = vrcp.pop %v525
    %v713 = vmul.f32 %v525, %v712
    %v714 = vsub.f32 1.0, %v713
    %v715 = vmul.f32 %v712, %v714
    %v716 = vadd.f32 %v712, %v715
    %vm717 = vweird.f32 %v525
    %vm718 = vweird.f32 %v712
    %vm719 = vmor %vm717, %vm718
    %v720 = vsel %vm719, %v712, %v716
    %v721 = vand.u32 2147483647, %v525
    %vm722 = vcmp.eq.f32.partialorder %v721, 8.507059e+37
    %v723 = vand.u32 %v525, 2147483648
    %v724 = vor.u32 1.1754944e-38, %v723
    %v725 = vsel %vm722, %v724, %v720
    %v726 = vrcp.pop %v527
    %v727 = vmul.f32 %v527, %v726
    %v728 = vsub.f32 1.0, %v727
    %v729 = vmul.f32 %v726, %v728
    %v730 = vadd.f32 %v726, %v729
    %vm731 = vweird.f32 %v527
    %vm732 = vweird.f32 %v726
    %vm733 = vmor %vm731, %vm732
    %v734 = vsel %vm733, %v726, %v730
    %v735 = vand.u32 2147483647, %v527
    %vm736 = vcmp.eq.f32.partialorder %v735, 8.507059e+37
    %v737 = vand.u32 %v527, 2147483648
    %v738 = vor.u32 1.1754944e-38, %v737
    %v739 = vsel %vm736, %v738, %v734
    %v740 = vrcp.pop %v529
    %v741 = vmul.f32 %v529, %v740
    %v742 = vsub.f32 1.0, %v741
    %v743 = vmul.f32 %v740, %v742
    %v744 = vadd.f32 %v740, %v743
    %vm745 = vweird.f32 %v529
    %vm746 = vweird.f32 %v740
    %vm747 = vmor %vm745, %vm746
    %v748 = vsel %vm747, %v740, %v744
    %v749 = vand.u32 2147483647, %v529
    %vm750 = vcmp.eq.f32.partialorder %v749, 8.507059e+37
    %v751 = vand.u32 %v529, 2147483648
    %v752 = vor.u32 1.1754944e-38, %v751
    %v753 = vsel %vm750, %v752, %v748
    %v754 = vmul.f32 %v467, %v543
    %v755 = vmul.f32 %v469, %v557
    %v756 = vmul.f32 %v471, %v571
    %v757 = vmul.f32 %v473, %v585
    %v758 = vmul.f32 %v475, %v599
    %v759 = vmul.f32 %v477, %v613
    %v760 = vmul.f32 %v479, %v627
    %v761 = vmul.f32 %v481, %v641
    %v762 = vmul.f32 %v483, %v655
    %v763 = vmul.f32 %v485, %v669
    %v764 = vmul.f32 %v487, %v683
    %v765 = vmul.f32 %v489, %v697
    %v766 = vmul.f32 %v491, %v711
    %v767 = vmul.f32 %v493, %v725
    %v768 = vmul.f32 %v495, %v739
    %v769 = vmul.f32 %v497, %v753
    %770 = vst [vmem:[#allocation7] sm:$0xff] %v754
    %771 = vst [vmem:[#allocation7 + $0x8] sm:$0xff] %v755
    %772 = vst [vmem:[#allocation7 + $0x10] sm:$0xff] %v756
    %773 = vst [vmem:[#allocation7 + $0x18] sm:$0xff] %v757
    %774 = vst [vmem:[#allocation7 + $0x20] sm:$0xff] %v758
    %775 = vst [vmem:[#allocation7 + $0x28] sm:$0xff] %v759
    %776 = vst [vmem:[#allocation7 + $0x30] sm:$0xff] %v760
    %777 = vst [vmem:[#allocation7 + $0x38] sm:$0xff] %v761
    %778 = vst [vmem:[#allocation7 + $0x40] sm:$0xff] %v762
    %779 = vst [vmem:[#allocation7 + $0x48] sm:$0xff] %v763
    %780 = vst [vmem:[#allocation7 + $0x50] sm:$0xff] %v764
    %781 = vst [vmem:[#allocation7 + $0x58] sm:$0xff] %v765
    %782 = vst [vmem:[#allocation7 + $0x60] sm:$0xff] %v766
    %783 = vst [vmem:[#allocation7 + $0x68] sm:$0xff] %v767
    %784 = vst [vmem:[#allocation7 + $0x70] sm:$0xff] %v768
    %785 = vst [vmem:[#allocation7 + $0x78] sm:$0xff] %v769
    %786 = vmatpush.msra.mxu0 %v769
    %787 = vmatpush.msra.mxu0 %v768
    %788 = vmatpush.msra.mxu0 %v767
    %789 = vmatpush.msra.mxu0 %v766
    %790 = vmatpush.msra.mxu0 %v765
    %791 = vmatpush.msra.mxu0 %v764
    %792 = vmatpush.msra.mxu0 %v763
    %793 = vmatpush.msra.mxu0 %v762
    %794 = vmatpush.msra.mxu0 %v761
    %795 = vmatpush.msra.mxu0 %v760
    %796 = vmatpush.msra.mxu0 %v759
    %797 = vmatpush.msra.mxu0 %v758
    %798 = vmatpush.msra.mxu0 %v757
    %799 = vmatpush.msra.mxu0 %v756
    %800 = vmatpush.msra.mxu0 %v755
    %801 = vmatpush.msra.mxu0 %v754
    %802 = vmatmul.f32.gmra.mxu0 %v225
    %v803 = vpop.f32.mrf.mxu0
    %v804 = vadd.f32 0.0, %v803
    %805 = vmatmul.f32.gmra.mxu0 %v228
    %v806 = vpop.f32.mrf.mxu0
    %v807 = vadd.f32 0.0, %v806
    %808 = vmatmul.f32.gmra.mxu0 %v231
    %v809 = vpop.f32.mrf.mxu0
    %v810 = vadd.f32 0.0, %v809
    %811 = vmatmul.f32.gmra.mxu0 %v234
    %v812 = vpop.f32.mrf.mxu0
    %v813 = vadd.f32 0.0, %v812
    %814 = vmatmul.f32.gmra.mxu0 %v237
    %v815 = vpop.f32.mrf.mxu0
    %v816 = vadd.f32 0.0, %v815
    %817 = vmatmul.f32.gmra.mxu0 %v240
    %v818 = vpop.f32.mrf.mxu0
    %v819 = vadd.f32 0.0, %v818
    %820 = vmatmul.f32.gmra.mxu0 %v243
    %v821 = vpop.f32.mrf.mxu0
    %v822 = vadd.f32 0.0, %v821
    %823 = vmatmul.f32.gmra.mxu0 %v246
    %v824 = vpop.f32.mrf.mxu0
    %v825 = vadd.f32 0.0, %v824
    %826 = vmatmul.f32.gmra.mxu0 %v249
    %v827 = vpop.f32.mrf.mxu0
    %v828 = vadd.f32 0.0, %v827
    %829 = vmatmul.f32.gmra.mxu0 %v252
    %v830 = vpop.f32.mrf.mxu0
    %v831 = vadd.f32 0.0, %v830
    %832 = vmatmul.f32.gmra.mxu0 %v255
    %v833 = vpop.f32.mrf.mxu0
    %v834 = vadd.f32 0.0, %v833
    %835 = vmatmul.f32.gmra.mxu0 %v258
    %v836 = vpop.f32.mrf.mxu0
    %v837 = vadd.f32 0.0, %v836
    %838 = vmatmul.f32.gmra.mxu0 %v261
    %v839 = vpop.f32.mrf.mxu0
    %v840 = vadd.f32 0.0, %v839
    %841 = vmatmul.f32.gmra.mxu0 %v264
    %v842 = vpop.f32.mrf.mxu0
    %v843 = vadd.f32 0.0, %v842
    %844 = vmatmul.f32.gmra.mxu0 %v267
    %v845 = vpop.f32.mrf.mxu0
    %v846 = vadd.f32 0.0, %v845
    %847 = vmatmul.f32.gmra.mxu0 %v270
    %v848 = vpop.f32.mrf.mxu0
    %v849 = vadd.f32 0.0, %v848
    %850 = vdwg.mxu0
    %v851 = vstv %s78
    %v852 = vmul.f32 %v851, %v804
    %v853 = vmul.f32 %v851, %v807
    %v854 = vmul.f32 %v851, %v810
    %v855 = vmul.f32 %v851, %v813
    %v856 = vmul.f32 %v851, %v816
    %v857 = vmul.f32 %v851, %v819
    %v858 = vmul.f32 %v851, %v822
    %v859 = vmul.f32 %v851, %v825
    %v860 = vmul.f32 %v851, %v828
    %v861 = vmul.f32 %v851, %v831
    %v862 = vmul.f32 %v851, %v834
    %v863 = vmul.f32 %v851, %v837
    %v864 = vmul.f32 %v851, %v840
    %v865 = vmul.f32 %v851, %v843
    %v866 = vmul.f32 %v851, %v846
    %v867 = vmul.f32 %v851, %v849
    %v868 = vadd.f32 %v852, %v79
    %v869 = vadd.f32 %v853, %v80
    %v870 = vadd.f32 %v854, %v81
    %v871 = vadd.f32 %v855, %v82
    %v872 = vadd.f32 %v856, %v83
    %v873 = vadd.f32 %v857, %v84
    %v874 = vadd.f32 %v858, %v85
    %v875 = vadd.f32 %v859, %v86
    %v876 = vadd.f32 %v860, %v87
    %v877 = vadd.f32 %v861, %v88
    %v878 = vadd.f32 %v862, %v89
    %v879 = vadd.f32 %v863, %v90
    %v880 = vadd.f32 %v864, %v91
    %v881 = vadd.f32 %v865, %v92
    %v882 = vadd.f32 %v866, %v93
    %v883 = vadd.f32 %v867, %v94
    %884 = vst [vmem:[#allocation6] sm:$0xff] %v868
    %885 = vst [vmem:[#allocation6 + $0x8] sm:$0xff] %v869
    %886 = vst [vmem:[#allocation6 + $0x10] sm:$0xff] %v870
    %887 = vst [vmem:[#allocation6 + $0x18] sm:$0xff] %v871
    %888 = vst [vmem:[#allocation6 + $0x20] sm:$0xff] %v872
    %889 = vst [vmem:[#allocation6 + $0x28] sm:$0xff] %v873
    %890 = vst [vmem:[#allocation6 + $0x30] sm:$0xff] %v874
    %891 = vst [vmem:[#allocation6 + $0x38] sm:$0xff] %v875
    %892 = vst [vmem:[#allocation6 + $0x40] sm:$0xff] %v876
    %893 = vst [vmem:[#allocation6 + $0x48] sm:$0xff] %v877
    %894 = vst [vmem:[#allocation6 + $0x50] sm:$0xff] %v878
    %895 = vst [vmem:[#allocation6 + $0x58] sm:$0xff] %v879
    %896 = vst [vmem:[#allocation6 + $0x60] sm:$0xff] %v880
    %897 = vst [vmem:[#allocation6 + $0x68] sm:$0xff] %v881
    %898 = vst [vmem:[#allocation6 + $0x70] sm:$0xff] %v882
    %899 = vst [vmem:[#allocation6 + $0x78] sm:$0xff] %v883
    %s900 = scalar_lea.vmem [#allocation3], 128
    %v901 = vld [vmem:[%s900] sm:$0xff]
    %v902 = vld [vmem:[%s900 + $0x8] sm:$0xff]
    %v903 = vld [vmem:[%s900 + $0x10] sm:$0xff]
    %v904 = vld [vmem:[%s900 + $0x18] sm:$0xff]
    %v905 = vld [vmem:[%s900 + $0x20] sm:$0xff]
    %v906 = vld [vmem:[%s900 + $0x28] sm:$0xff]
    %v907 = vld [vmem:[%s900 + $0x30] sm:$0xff]
    %v908 = vld [vmem:[%s900 + $0x38] sm:$0xff]
    %v909 = vld [vmem:[%s900 + $0x40] sm:$0xff]
    %v910 = vld [vmem:[%s900 + $0x48] sm:$0xff]
    %v911 = vld [vmem:[%s900 + $0x50] sm:$0xff]
    %v912 = vld [vmem:[%s900 + $0x58] sm:$0xff]
    %v913 = vld [vmem:[%s900 + $0x60] sm:$0xff]
    %v914 = vld [vmem:[%s900 + $0x68] sm:$0xff]
    %v915 = vld [vmem:[%s900 + $0x70] sm:$0xff]
    %v916 = vld [vmem:[%s900 + $0x78] sm:$0xff]
    %917 = vmatpush.msra.mxu0 %v916
    %918 = vmatpush.msra.mxu0 %v915
    %919 = vmatpush.msra.mxu0 %v914
    %920 = vmatpush.msra.mxu0 %v913
    %921 = vmatpush.msra.mxu0 %v912
    %922 = vmatpush.msra.mxu0 %v911
    %923 = vmatpush.msra.mxu0 %v910
    %924 = vmatpush.msra.mxu0 %v909
    %925 = vmatpush.msra.mxu0 %v908
    %926 = vmatpush.msra.mxu0 %v907
    %927 = vmatpush.msra.mxu0 %v906
    %928 = vmatpush.msra.mxu0 %v905
    %929 = vmatpush.msra.mxu0 %v904
    %930 = vmatpush.msra.mxu0 %v903
    %931 = vmatpush.msra.mxu0 %v902
    %932 = vmatpush.msra.mxu0 %v901
    %933 = vmatmul.f32.gmra.mxu0 %v38
    %v934 = vpop.f32.mrf.mxu0
    %v935 = vadd.f32 %v98, %v934
    %936 = vmatmul.f32.gmra.mxu0 %v39
    %v937 = vpop.f32.mrf.mxu0
    %v938 = vadd.f32 %v103, %v937
    %939 = vmatmul.f32.gmra.mxu0 %v40
    %v940 = vpop.f32.mrf.mxu0
    %v941 = vadd.f32 %v108, %v940
    %942 = vmatmul.f32.gmra.mxu0 %v41
    %v943 = vpop.f32.mrf.mxu0
    %v944 = vadd.f32 %v113, %v943
    %945 = vmatmul.f32.gmra.mxu0 %v42
    %v946 = vpop.f32.mrf.mxu0
    %v947 = vadd.f32 %v118, %v946
    %948 = vmatmul.f32.gmra.mxu0 %v43
    %v949 = vpop.f32.mrf.mxu0
    %v950 = vadd.f32 %v123, %v949
    %951 = vmatmul.f32.gmra.mxu0 %v44
    %v952 = vpop.f32.mrf.mxu0
    %v953 = vadd.f32 %v128, %v952
    %954 = vmatmul.f32.gmra.mxu0 %v45
    %v955 = vpop.f32.mrf.mxu0
    %v956 = vadd.f32 %v133, %v955
    %957 = vmatmul.f32.gmra.mxu0 %v46
    %v958 = vpop.f32.mrf.mxu0
    %v959 = vadd.f32 %v138, %v958
    %960 = vmatmul.f32.gmra.mxu0 %v47
    %v961 = vpop.f32.mrf.mxu0
    %v962 = vadd.f32 %v143, %v961
    %963 = vmatmul.f32.gmra.mxu0 %v48
    %v964 = vpop.f32.mrf.mxu0
    %v965 = vadd.f32 %v148, %v964
    %966 = vmatmul.f32.gmra.mxu0 %v49
    %v967 = vpop.f32.mrf.mxu0
    %v968 = vadd.f32 %v153, %v967
    %969 = vmatmul.f32.gmra.mxu0 %v50
    %v970 = vpop.f32.mrf.mxu0
    %v971 = vadd.f32 %v158, %v970
    %972 = vmatmul.f32.gmra.mxu0 %v51
    %v973 = vpop.f32.mrf.mxu0
    %v974 = vadd.f32 %v163, %v973
    %975 = vmatmul.f32.gmra.mxu0 %v52
    %v976 = vpop.f32.mrf.mxu0
    %v977 = vadd.f32 %v168, %v976
    %978 = vmatmul.f32.gmra.mxu0 %v53
    %v979 = vpop.f32.mrf.mxu0
    %v980 = vadd.f32 %v173, %v979
    %981 = vmatmul.f32.gmra.mxu0 %v54
    %v982 = vpop.f32.mrf.mxu0
    %v983 = vadd.f32 %v178, %v982
    %984 = vmatmul.f32.gmra.mxu0 %v55
    %v985 = vpop.f32.mrf.mxu0
    %v986 = vadd.f32 %v183, %v985
    %987 = vmatmul.f32.gmra.mxu0 %v56
    %v988 = vpop.f32.mrf.mxu0
    %v989 = vadd.f32 %v188, %v988
    %990 = vmatmul.f32.gmra.mxu0 %v57
    %v991 = vpop.f32.mrf.mxu0
    %v992 = vadd.f32 %v193, %v991
    %993 = vdwg.mxu0
    %994 = vxpose.xlu0.b32.start [1/16] %v935, 128
    %995 = vxpose.xlu0.b32.cont [2/16] %v938, 128
    %996 = vxpose.xlu0.b32.cont [3/16] 0.0, 128
    %997 = vxpose.xlu0.b32.cont [4/16] 0.0, 128
    %998 = vxpose.xlu0.b32.cont [5/16] 0.0, 128
    %999 = vxpose.xlu0.b32.cont [6/16] 0.0, 128
    %1000 = vxpose.xlu0.b32.cont [7/16] 0.0, 128
    %1001 = vxpose.xlu0.b32.cont [8/16] 0.0, 128
    %1002 = vxpose.xlu0.b32.cont [9/16] 0.0, 128
    %1003 = vxpose.xlu0.b32.cont [10/16] 0.0, 128
    %1004 = vxpose.xlu0.b32.cont [11/16] 0.0, 128
    %1005 = vxpose.xlu0.b32.cont [12/16] 0.0, 128
    %1006 = vxpose.xlu0.b32.cont [13/16] 0.0, 128
    %1007 = vxpose.xlu0.b32.cont [14/16] 0.0, 128
    %1008 = vxpose.xlu0.b32.cont [15/16] 0.0, 128
    %1009 = vxpose.xlu0.b32.end [16/16] 0.0, 128
    %v1010 = vpop.trf.xlu0
    %v1011 = vpop.trf.xlu0
    %v1012 = vpop.trf.xlu0
    %v1013 = vpop.trf.xlu0
    %v1014 = vpop.trf.xlu0
    %v1015 = vpop.trf.xlu0
    %v1016 = vpop.trf.xlu0
    %v1017 = vpop.trf.xlu0
    %v1018 = vpop.trf.xlu0
    %v1019 = vpop.trf.xlu0
    %v1020 = vpop.trf.xlu0
    %v1021 = vpop.trf.xlu0
    %v1022 = vpop.trf.xlu0
    %v1023 = vpop.trf.xlu0
    %v1024 = vpop.trf.xlu0
    %v1025 = vpop.trf.xlu0
    %v1027 = vsel %vm304, %v1010, 0
    %v1030 = vsel %vm304, %v1011, 0
    %v1033 = vsel %vm304, %v1012, 0
    %v1036 = vsel %vm304, %v1013, 0
    %v1039 = vsel %vm304, %v1014, 0
    %v1042 = vsel %vm304, %v1015, 0
    %v1045 = vsel %vm304, %v1016, 0
    %v1048 = vsel %vm304, %v1017, 0
    %v1051 = vsel %vm304, %v1018, 0
    %v1054 = vsel %vm304, %v1019, 0
    %v1057 = vsel %vm304, %v1020, 0
    %v1060 = vsel %vm304, %v1021, 0
    %v1063 = vsel %vm304, %v1022, 0
    %v1066 = vsel %vm304, %v1023, 0
    %v1069 = vsel %vm304, %v1024, 0
    %v1072 = vsel %vm304, %v1025, 0
    %1074 = vmatpush.msra.mxu0 0.0
    %1075 = vmatpush.msra.mxu0 0.0
    %1076 = vmatpush.msra.mxu0 0.0
    %1077 = vmatpush.msra.mxu0 0.0
    %1078 = vmatpush.msra.mxu0 0.0
    %1079 = vmatpush.msra.mxu0 0.0
    %1080 = vmatpush.msra.mxu0 0.0
    %1081 = vmatpush.msra.mxu0 0.0
    %1082 = vmatpush.msra.mxu0 0.0
    %1083 = vmatpush.msra.mxu0 0.0
    %1084 = vmatpush.msra.mxu0 0.0
    %1085 = vmatpush.msra.mxu0 0.0
    %1086 = vmatpush.msra.mxu0 0.0
    %1087 = vmatpush.msra.mxu0 0.0
    %1088 = vmatpush.msra.mxu0 %v944
    %1089 = vmatpush.msra.mxu0 %v941
    %1090 = vmatmul.f32.gmra.mxu0 %v1027
    %v1091 = vpop.f32.mrf.mxu0
    %v1092 = vadd.f32 0.0, %v1091
    %1093 = vmatmul.f32.gmra.mxu0 %v1030
    %v1094 = vpop.f32.mrf.mxu0
    %v1095 = vadd.f32 0.0, %v1094
    %1096 = vmatmul.f32.gmra.mxu0 %v1033
    %v1097 = vpop.f32.mrf.mxu0
    %v1098 = vadd.f32 0.0, %v1097
    %1099 = vmatmul.f32.gmra.mxu0 %v1036
    %v1100 = vpop.f32.mrf.mxu0
    %v1101 = vadd.f32 0.0, %v1100
    %1102 = vmatmul.f32.gmra.mxu0 %v1039
    %v1103 = vpop.f32.mrf.mxu0
    %v1104 = vadd.f32 0.0, %v1103
    %1105 = vmatmul.f32.gmra.mxu0 %v1042
    %v1106 = vpop.f32.mrf.mxu0
    %v1107 = vadd.f32 0.0, %v1106
    %1108 = vmatmul.f32.gmra.mxu0 %v1045
    %v1109 = vpop.f32.mrf.mxu0
    %v1110 = vadd.f32 0.0, %v1109
    %1111 = vmatmul.f32.gmra.mxu0 %v1048
    %v1112 = vpop.f32.mrf.mxu0
    %v1113 = vadd.f32 0.0, %v1112
    %1114 = vmatmul.f32.gmra.mxu0 %v1051
    %v1115 = vpop.f32.mrf.mxu0
    %v1116 = vadd.f32 0.0, %v1115
    %1117 = vmatmul.f32.gmra.mxu0 %v1054
    %v1118 = vpop.f32.mrf.mxu0
    %v1119 = vadd.f32 0.0, %v1118
    %1120 = vmatmul.f32.gmra.mxu0 %v1057
    %v1121 = vpop.f32.mrf.mxu0
    %v1122 = vadd.f32 0.0, %v1121
    %1123 = vmatmul.f32.gmra.mxu0 %v1060
    %v1124 = vpop.f32.mrf.mxu0
    %v1125 = vadd.f32 0.0, %v1124
    %1126 = vmatmul.f32.gmra.mxu0 %v1063
    %v1127 = vpop.f32.mrf.mxu0
    %v1128 = vadd.f32 0.0, %v1127
    %1129 = vmatmul.f32.gmra.mxu0 %v1066
    %v1130 = vpop.f32.mrf.mxu0
    %v1131 = vadd.f32 0.0, %v1130
    %1132 = vmatmul.f32.gmra.mxu0 %v1069
    %v1133 = vpop.f32.mrf.mxu0
    %v1134 = vadd.f32 0.0, %v1133
    %1135 = vmatmul.f32.gmra.mxu0 %v1072
    %v1136 = vpop.f32.mrf.mxu0
    %v1137 = vadd.f32 0.0, %v1136
    %1138 = vdwg.mxu0
    %1139 = vmax.xlane.f32.xlu0 %v1092
    %v1140 = vpop.xlane.xlu0 %1139
    %1141 = vmax.xlane.f32.xlu0 %v1095
    %v1142 = vpop.xlane.xlu0 %1141
    %1143 = vmax.xlane.f32.xlu0 %v1098
    %v1144 = vpop.xlane.xlu0 %1143
    %1145 = vmax.xlane.f32.xlu0 %v1101
    %v1146 = vpop.xlane.xlu0 %1145
    %1147 = vmax.xlane.f32.xlu0 %v1104
    %v1148 = vpop.xlane.xlu0 %1147
    %1149 = vmax.xlane.f32.xlu0 %v1107
    %v1150 = vpop.xlane.xlu0 %1149
    %1151 = vmax.xlane.f32.xlu0 %v1110
    %v1152 = vpop.xlane.xlu0 %1151
    %1153 = vmax.xlane.f32.xlu0 %v1113
    %v1154 = vpop.xlane.xlu0 %1153
    %1155 = vmax.xlane.f32.xlu0 %v1116
    %v1156 = vpop.xlane.xlu0 %1155
    %1157 = vmax.xlane.f32.xlu0 %v1119
    %v1158 = vpop.xlane.xlu0 %1157
    %1159 = vmax.xlane.f32.xlu0 %v1122
    %v1160 = vpop.xlane.xlu0 %1159
    %1161 = vmax.xlane.f32.xlu0 %v1125
    %v1162 = vpop.xlane.xlu0 %1161
    %1163 = vmax.xlane.f32.xlu0 %v1128
    %v1164 = vpop.xlane.xlu0 %1163
    %1165 = vmax.xlane.f32.xlu0 %v1131
    %v1166 = vpop.xlane.xlu0 %1165
    %1167 = vmax.xlane.f32.xlu0 %v1134
    %v1168 = vpop.xlane.xlu0 %1167
    %1169 = vmax.xlane.f32.xlu0 %v1137
    %v1170 = vpop.xlane.xlu0 %1169
    %v1171 = vsub.f32 %v1092, %v1140
    %v1172 = vsub.f32 %v1095, %v1142
    %v1173 = vsub.f32 %v1098, %v1144
    %v1174 = vsub.f32 %v1101, %v1146
    %v1175 = vsub.f32 %v1104, %v1148
    %v1176 = vsub.f32 %v1107, %v1150
    %v1177 = vsub.f32 %v1110, %v1152
    %v1178 = vsub.f32 %v1113, %v1154
    %v1179 = vsub.f32 %v1116, %v1156
    %v1180 = vsub.f32 %v1119, %v1158
    %v1181 = vsub.f32 %v1122, %v1160
    %v1182 = vsub.f32 %v1125, %v1162
    %v1183 = vsub.f32 %v1128, %v1164
    %v1184 = vsub.f32 %v1131, %v1166
    %v1185 = vsub.f32 %v1134, %v1168
    %v1186 = vsub.f32 %v1137, %v1170
    %v1187 = vmul.f32 %v1171, 1.442695
    %v1188 = vpow.pop %v1187
    %v1189 = vmul.f32 %v1172, 1.442695
    %v1190 = vpow.pop %v1189
    %v1191 = vmul.f32 %v1173, 1.442695
    %v1192 = vpow.pop %v1191
    %v1193 = vmul.f32 %v1174, 1.442695
    %v1194 = vpow.pop %v1193
    %v1195 = vmul.f32 %v1175, 1.442695
    %v1196 = vpow.pop %v1195
    %v1197 = vmul.f32 %v1176, 1.442695
    %v1198 = vpow.pop %v1197
    %v1199 = vmul.f32 %v1177, 1.442695
    %v1200 = vpow.pop %v1199
    %v1201 = vmul.f32 %v1178, 1.442695
    %v1202 = vpow.pop %v1201
    %v1203 = vmul.f32 %v1179, 1.442695
    %v1204 = vpow.pop %v1203
    %v1205 = vmul.f32 %v1180, 1.442695
    %v1206 = vpow.pop %v1205
    %v1207 = vmul.f32 %v1181, 1.442695
    %v1208 = vpow.pop %v1207
    %v1209 = vmul.f32 %v1182, 1.442695
    %v1210 = vpow.pop %v1209
    %v1211 = vmul.f32 %v1183, 1.442695
    %v1212 = vpow.pop %v1211
    %v1213 = vmul.f32 %v1184, 1.442695
    %v1214 = vpow.pop %v1213
    %v1215 = vmul.f32 %v1185, 1.442695
    %v1216 = vpow.pop %v1215
    %v1217 = vmul.f32 %v1186, 1.442695
    %v1218 = vpow.pop %v1217
    %1219 = vadd.xlane.f32.xlu0 %v1188
    %v1220 = vpop.xlane.xlu0 %1219
    %1221 = vadd.xlane.f32.xlu0 %v1190
    %v1222 = vpop.xlane.xlu0 %1221
    %1223 = vadd.xlane.f32.xlu0 %v1192
    %v1224 = vpop.xlane.xlu0 %1223
    %1225 = vadd.xlane.f32.xlu0 %v1194
    %v1226 = vpop.xlane.xlu0 %1225
    %1227 = vadd.xlane.f32.xlu0 %v1196
    %v1228 = vpop.xlane.xlu0 %1227
    %1229 = vadd.xlane.f32.xlu0 %v1198
    %v1230 = vpop.xlane.xlu0 %1229
    %1231 = vadd.xlane.f32.xlu0 %v1200
    %v1232 = vpop.xlane.xlu0 %1231
    %1233 = vadd.xlane.f32.xlu0 %v1202
    %v1234 = vpop.xlane.xlu0 %1233
    %1235 = vadd.xlane.f32.xlu0 %v1204
    %v1236 = vpop.xlane.xlu0 %1235
    %1237 = vadd.xlane.f32.xlu0 %v1206
    %v1238 = vpop.xlane.xlu0 %1237
    %1239 = vadd.xlane.f32.xlu0 %v1208
    %v1240 = vpop.xlane.xlu0 %1239
    %1241 = vadd.xlane.f32.xlu0 %v1210
    %v1242 = vpop.xlane.xlu0 %1241
    %1243 = vadd.xlane.f32.xlu0 %v1212
    %v1244 = vpop.xlane.xlu0 %1243
    %1245 = vadd.xlane.f32.xlu0 %v1214
    %v1246 = vpop.xlane.xlu0 %1245
    %1247 = vadd.xlane.f32.xlu0 %v1216
    %v1248 = vpop.xlane.xlu0 %1247
    %1249 = vadd.xlane.f32.xlu0 %v1218
    %v1250 = vpop.xlane.xlu0 %1249
    %v1251 = vrcp.pop %v1220
    %v1252 = vmul.f32 %v1220, %v1251
    %v1253 = vsub.f32 1.0, %v1252
    %v1254 = vmul.f32 %v1251, %v1253
    %v1255 = vadd.f32 %v1251, %v1254
    %vm1256 = vweird.f32 %v1220
    %vm1257 = vweird.f32 %v1251
    %vm1258 = vmor %vm1256, %vm1257
    %v1259 = vsel %vm1258, %v1251, %v1255
    %v1260 = vand.u32 2147483647, %v1220
    %vm1261 = vcmp.eq.f32.partialorder %v1260, 8.507059e+37
    %v1262 = vand.u32 %v1220, 2147483648
    %v1263 = vor.u32 1.1754944e-38, %v1262
    %v1264 = vsel %vm1261, %v1263, %v1259
    %v1265 = vrcp.pop %v1222
    %v1266 = vmul.f32 %v1222, %v1265
    %v1267 = vsub.f32 1.0, %v1266
    %v1268 = vmul.f32 %v1265, %v1267
    %v1269 = vadd.f32 %v1265, %v1268
    %vm1270 = vweird.f32 %v1222
    %vm1271 = vweird.f32 %v1265
    %vm1272 = vmor %vm1270, %vm1271
    %v1273 = vsel %vm1272, %v1265, %v1269
    %v1274 = vand.u32 2147483647, %v1222
    %vm1275 = vcmp.eq.f32.partialorder %v1274, 8.507059e+37
    %v1276 = vand.u32 %v1222, 2147483648
    %v1277 = vor.u32 1.1754944e-38, %v1276
    %v1278 = vsel %vm1275, %v1277, %v1273
    %v1279 = vrcp.pop %v1224
    %v1280 = vmul.f32 %v1224, %v1279
    %v1281 = vsub.f32 1.0, %v1280
    %v1282 = vmul.f32 %v1279, %v1281
    %v1283 = vadd.f32 %v1279, %v1282
    %vm1284 = vweird.f32 %v1224
    %vm1285 = vweird.f32 %v1279
    %vm1286 = vmor %vm1284, %vm1285
    %v1287 = vsel %vm1286, %v1279, %v1283
    %v1288 = vand.u32 2147483647, %v1224
    %vm1289 = vcmp.eq.f32.partialorder %v1288, 8.507059e+37
    %v1290 = vand.u32 %v1224, 2147483648
    %v1291 = vor.u32 1.1754944e-38, %v1290
    %v1292 = vsel %vm1289, %v1291, %v1287
    %v1293 = vrcp.pop %v1226
    %v1294 = vmul.f32 %v1226, %v1293
    %v1295 = vsub.f32 1.0, %v1294
    %v1296 = vmul.f32 %v1293, %v1295
    %v1297 = vadd.f32 %v1293, %v1296
    %vm1298 = vweird.f32 %v1226
    %vm1299 = vweird.f32 %v1293
    %vm1300 = vmor %vm1298, %vm1299
    %v1301 = vsel %vm1300, %v1293, %v1297
    %v1302 = vand.u32 2147483647, %v1226
    %vm1303 = vcmp.eq.f32.partialorder %v1302, 8.507059e+37
    %v1304 = vand.u32 %v1226, 2147483648
    %v1305 = vor.u32 1.1754944e-38, %v1304
    %v1306 = vsel %vm1303, %v1305, %v1301
    %v1307 = vrcp.pop %v1228
    %v1308 = vmul.f32 %v1228, %v1307
    %v1309 = vsub.f32 1.0, %v1308
    %v1310 = vmul.f32 %v1307, %v1309
    %v1311 = vadd.f32 %v1307, %v1310
    %vm1312 = vweird.f32 %v1228
    %vm1313 = vweird.f32 %v1307
    %vm1314 = vmor %vm1312, %vm1313
    %v1315 = vsel %vm1314, %v1307, %v1311
    %v1316 = vand.u32 2147483647, %v1228
    %vm1317 = vcmp.eq.f32.partialorder %v1316, 8.507059e+37
    %v1318 = vand.u32 %v1228, 2147483648
    %v1319 = vor.u32 1.1754944e-38, %v1318
    %v1320 = vsel %vm1317, %v1319, %v1315
    %v1321 = vrcp.pop %v1230
    %v1322 = vmul.f32 %v1230, %v1321
    %v1323 = vsub.f32 1.0, %v1322
    %v1324 = vmul.f32 %v1321, %v1323
    %v1325 = vadd.f32 %v1321, %v1324
    %vm1326 = vweird.f32 %v1230
    %vm1327 = vweird.f32 %v1321
    %vm1328 = vmor %vm1326, %vm1327
    %v1329 = vsel %vm1328, %v1321, %v1325
    %v1330 = vand.u32 2147483647, %v1230
    %vm1331 = vcmp.eq.f32.partialorder %v1330, 8.507059e+37
    %v1332 = vand.u32 %v1230, 2147483648
    %v1333 = vor.u32 1.1754944e-38, %v1332
    %v1334 = vsel %vm1331, %v1333, %v1329
    %v1335 = vrcp.pop %v1232
    %v1336 = vmul.f32 %v1232, %v1335
    %v1337 = vsub.f32 1.0, %v1336
    %v1338 = vmul.f32 %v1335, %v1337
    %v1339 = vadd.f32 %v1335, %v1338
    %vm1340 = vweird.f32 %v1232
    %vm1341 = vweird.f32 %v1335
    %vm1342 = vmor %vm1340, %vm1341
    %v1343 = vsel %vm1342, %v1335, %v1339
    %v1344 = vand.u32 2147483647, %v1232
    %vm1345 = vcmp.eq.f32.partialorder %v1344, 8.507059e+37
    %v1346 = vand.u32 %v1232, 2147483648
    %v1347 = vor.u32 1.1754944e-38, %v1346
    %v1348 = vsel %vm1345, %v1347, %v1343
    %v1349 = vrcp.pop %v1234
    %v1350 = vmul.f32 %v1234, %v1349
    %v1351 = vsub.f32 1.0, %v1350
    %v1352 = vmul.f32 %v1349, %v1351
    %v1353 = vadd.f32 %v1349, %v1352
    %vm1354 = vweird.f32 %v1234
    %vm1355 = vweird.f32 %v1349
    %vm1356 = vmor %vm1354, %vm1355
    %v1357 = vsel %vm1356, %v1349, %v1353
    %v1358 = vand.u32 2147483647, %v1234
    %vm1359 = vcmp.eq.f32.partialorder %v1358, 8.507059e+37
    %v1360 = vand.u32 %v1234, 2147483648
    %v1361 = vor.u32 1.1754944e-38, %v1360
    %v1362 = vsel %vm1359, %v1361, %v1357
    %v1363 = vrcp.pop %v1236
    %v1364 = vmul.f32 %v1236, %v1363
    %v1365 = vsub.f32 1.0, %v1364
    %v1366 = vmul.f32 %v1363, %v1365
    %v1367 = vadd.f32 %v1363, %v1366
    %vm1368 = vweird.f32 %v1236
    %vm1369 = vweird.f32 %v1363
    %vm1370 = vmor %vm1368, %vm1369
    %v1371 = vsel %vm1370, %v1363, %v1367
    %v1372 = vand.u32 2147483647, %v1236
    %vm1373 = vcmp.eq.f32.partialorder %v1372, 8.507059e+37
    %v1374 = vand.u32 %v1236, 2147483648
    %v1375 = vor.u32 1.1754944e-38, %v1374
    %v1376 = vsel %vm1373, %v1375, %v1371
    %v1377 = vrcp.pop %v1238
    %v1378 = vmul.f32 %v1238, %v1377
    %v1379 = vsub.f32 1.0, %v1378
    %v1380 = vmul.f32 %v1377, %v1379
    %v1381 = vadd.f32 %v1377, %v1380
    %vm1382 = vweird.f32 %v1238
    %vm1383 = vweird.f32 %v1377
    %vm1384 = vmor %vm1382, %vm1383
    %v1385 = vsel %vm1384, %v1377, %v1381
    %v1386 = vand.u32 2147483647, %v1238
    %vm1387 = vcmp.eq.f32.partialorder %v1386, 8.507059e+37
    %v1388 = vand.u32 %v1238, 2147483648
    %v1389 = vor.u32 1.1754944e-38, %v1388
    %v1390 = vsel %vm1387, %v1389, %v1385
    %v1391 = vrcp.pop %v1240
    %v1392 = vmul.f32 %v1240, %v1391
    %v1393 = vsub.f32 1.0, %v1392
    %v1394 = vmul.f32 %v1391, %v1393
    %v1395 = vadd.f32 %v1391, %v1394
    %vm1396 = vweird.f32 %v1240
    %vm1397 = vweird.f32 %v1391
    %vm1398 = vmor %vm1396, %vm1397
    %v1399 = vsel %vm1398, %v1391, %v1395
    %v1400 = vand.u32 2147483647, %v1240
    %vm1401 = vcmp.eq.f32.partialorder %v1400, 8.507059e+37
    %v1402 = vand.u32 %v1240, 2147483648
    %v1403 = vor.u32 1.1754944e-38, %v1402
    %v1404 = vsel %vm1401, %v1403, %v1399
    %v1405 = vrcp.pop %v1242
    %v1406 = vmul.f32 %v1242, %v1405
    %v1407 = vsub.f32 1.0, %v1406
    %v1408 = vmul.f32 %v1405, %v1407
    %v1409 = vadd.f32 %v1405, %v1408
    %vm1410 = vweird.f32 %v1242
    %vm1411 = vweird.f32 %v1405
    %vm1412 = vmor %vm1410, %vm1411
    %v1413 = vsel %vm1412, %v1405, %v1409
    %v1414 = vand.u32 2147483647, %v1242
    %vm1415 = vcmp.eq.f32.partialorder %v1414, 8.507059e+37
    %v1416 = vand.u32 %v1242, 2147483648
    %v1417 = vor.u32 1.1754944e-38, %v1416
    %v1418 = vsel %vm1415, %v1417, %v1413
    %v1419 = vrcp.pop %v1244
    %v1420 = vmul.f32 %v1244, %v1419
    %v1421 = vsub.f32 1.0, %v1420
    %v1422 = vmul.f32 %v1419, %v1421
    %v1423 = vadd.f32 %v1419, %v1422
    %vm1424 = vweird.f32 %v1244
    %vm1425 = vweird.f32 %v1419
    %vm1426 = vmor %vm1424, %vm1425
    %v1427 = vsel %vm1426, %v1419, %v1423
    %v1428 = vand.u32 2147483647, %v1244
    %vm1429 = vcmp.eq.f32.partialorder %v1428, 8.507059e+37
    %v1430 = vand.u32 %v1244, 2147483648
    %v1431 = vor.u32 1.1754944e-38, %v1430
    %v1432 = vsel %vm1429, %v1431, %v1427
    %v1433 = vrcp.pop %v1246
    %v1434 = vmul.f32 %v1246, %v1433
    %v1435 = vsub.f32 1.0, %v1434
    %v1436 = vmul.f32 %v1433, %v1435
    %v1437 = vadd.f32 %v1433, %v1436
    %vm1438 = vweird.f32 %v1246
    %vm1439 = vweird.f32 %v1433
    %vm1440 = vmor %vm1438, %vm1439
    %v1441 = vsel %vm1440, %v1433, %v1437
    %v1442 = vand.u32 2147483647, %v1246
    %vm1443 = vcmp.eq.f32.partialorder %v1442, 8.507059e+37
    %v1444 = vand.u32 %v1246, 2147483648
    %v1445 = vor.u32 1.1754944e-38, %v1444
    %v1446 = vsel %vm1443, %v1445, %v1441
    %v1447 = vrcp.pop %v1248
    %v1448 = vmul.f32 %v1248, %v1447
    %v1449 = vsub.f32 1.0, %v1448
    %v1450 = vmul.f32 %v1447, %v1449
    %v1451 = vadd.f32 %v1447, %v1450
    %vm1452 = vweird.f32 %v1248
    %vm1453 = vweird.f32 %v1447
    %vm1454 = vmor %vm1452, %vm1453
    %v1455 = vsel %vm1454, %v1447, %v1451
    %v1456 = vand.u32 2147483647, %v1248
    %vm1457 = vcmp.eq.f32.partialorder %v1456, 8.507059e+37
    %v1458 = vand.u32 %v1248, 2147483648
    %v1459 = vor.u32 1.1754944e-38, %v1458
    %v1460 = vsel %vm1457, %v1459, %v1455
    %v1461 = vrcp.pop %v1250
    %v1462 = vmul.f32 %v1250, %v1461
    %v1463 = vsub.f32 1.0, %v1462
    %v1464 = vmul.f32 %v1461, %v1463
    %v1465 = vadd.f32 %v1461, %v1464
    %vm1466 = vweird.f32 %v1250
    %vm1467 = vweird.f32 %v1461
    %vm1468 = vmor %vm1466, %vm1467
    %v1469 = vsel %vm1468, %v1461, %v1465
    %v1470 = vand.u32 2147483647, %v1250
    %vm1471 = vcmp.eq.f32.partialorder %v1470, 8.507059e+37
    %v1472 = vand.u32 %v1250, 2147483648
    %v1473 = vor.u32 1.1754944e-38, %v1472
    %v1474 = vsel %vm1471, %v1473, %v1469
    %v1475 = vmul.f32 %v1188, %v1264
    %v1476 = vmul.f32 %v1190, %v1278
    %v1477 = vmul.f32 %v1192, %v1292
    %v1478 = vmul.f32 %v1194, %v1306
    %v1479 = vmul.f32 %v1196, %v1320
    %v1480 = vmul.f32 %v1198, %v1334
    %v1481 = vmul.f32 %v1200, %v1348
    %v1482 = vmul.f32 %v1202, %v1362
    %v1483 = vmul.f32 %v1204, %v1376
    %v1484 = vmul.f32 %v1206, %v1390
    %v1485 = vmul.f32 %v1208, %v1404
    %v1486 = vmul.f32 %v1210, %v1418
    %v1487 = vmul.f32 %v1212, %v1432
    %v1488 = vmul.f32 %v1214, %v1446
    %v1489 = vmul.f32 %v1216, %v1460
    %v1490 = vmul.f32 %v1218, %v1474
    %s1491 = scalar_lea.vmem [#allocation7], 128
    %1492 = vst [vmem:[%s1491] sm:$0xff] %v1475
    %1493 = vst [vmem:[%s1491 + $0x8] sm:$0xff] %v1476
    %1494 = vst [vmem:[%s1491 + $0x10] sm:$0xff] %v1477
    %1495 = vst [vmem:[%s1491 + $0x18] sm:$0xff] %v1478
    %1496 = vst [vmem:[%s1491 + $0x20] sm:$0xff] %v1479
    %1497 = vst [vmem:[%s1491 + $0x28] sm:$0xff] %v1480
    %1498 = vst [vmem:[%s1491 + $0x30] sm:$0xff] %v1481
    %1499 = vst [vmem:[%s1491 + $0x38] sm:$0xff] %v1482
    %1500 = vst [vmem:[%s1491 + $0x40] sm:$0xff] %v1483
    %1501 = vst [vmem:[%s1491 + $0x48] sm:$0xff] %v1484
    %1502 = vst [vmem:[%s1491 + $0x50] sm:$0xff] %v1485
    %1503 = vst [vmem:[%s1491 + $0x58] sm:$0xff] %v1486
    %1504 = vst [vmem:[%s1491 + $0x60] sm:$0xff] %v1487
    %1505 = vst [vmem:[%s1491 + $0x68] sm:$0xff] %v1488
    %1506 = vst [vmem:[%s1491 + $0x70] sm:$0xff] %v1489
    %1507 = vst [vmem:[%s1491 + $0x78] sm:$0xff] %v1490
    %1508 = vmatpush.msra.mxu0 %v1490
    %1509 = vmatpush.msra.mxu0 %v1489
    %1510 = vmatpush.msra.mxu0 %v1488
    %1511 = vmatpush.msra.mxu0 %v1487
    %1512 = vmatpush.msra.mxu0 %v1486
    %1513 = vmatpush.msra.mxu0 %v1485
    %1514 = vmatpush.msra.mxu0 %v1484
    %1515 = vmatpush.msra.mxu0 %v1483
    %1516 = vmatpush.msra.mxu0 %v1482
    %1517 = vmatpush.msra.mxu0 %v1481
    %1518 = vmatpush.msra.mxu0 %v1480
    %1519 = vmatpush.msra.mxu0 %v1479
    %1520 = vmatpush.msra.mxu0 %v1478
    %1521 = vmatpush.msra.mxu0 %v1477
    %1522 = vmatpush.msra.mxu0 %v1476
    %1523 = vmatpush.msra.mxu0 %v1475
    %1524 = vmatmul.f32.gmra.mxu0 %v947
    %v1525 = vpop.f32.mrf.mxu0
    %v1526 = vadd.f32 0.0, %v1525
    %1527 = vmatmul.f32.gmra.mxu0 %v950
    %v1528 = vpop.f32.mrf.mxu0
    %v1529 = vadd.f32 0.0, %v1528
    %1530 = vmatmul.f32.gmra.mxu0 %v953
    %v1531 = vpop.f32.mrf.mxu0
    %v1532 = vadd.f32 0.0, %v1531
    %1533 = vmatmul.f32.gmra.mxu0 %v956
    %v1534 = vpop.f32.mrf.mxu0
    %v1535 = vadd.f32 0.0, %v1534
    %1536 = vmatmul.f32.gmra.mxu0 %v959
    %v1537 = vpop.f32.mrf.mxu0
    %v1538 = vadd.f32 0.0, %v1537
    %1539 = vmatmul.f32.gmra.mxu0 %v962
    %v1540 = vpop.f32.mrf.mxu0
    %v1541 = vadd.f32 0.0, %v1540
    %1542 = vmatmul.f32.gmra.mxu0 %v965
    %v1543 = vpop.f32.mrf.mxu0
    %v1544 = vadd.f32 0.0, %v1543
    %1545 = vmatmul.f32.gmra.mxu0 %v968
    %v1546 = vpop.f32.mrf.mxu0
    %v1547 = vadd.f32 0.0, %v1546
    %1548 = vmatmul.f32.gmra.mxu0 %v971
    %v1549 = vpop.f32.mrf.mxu0
    %v1550 = vadd.f32 0.0, %v1549
    %1551 = vmatmul.f32.gmra.mxu0 %v974
    %v1552 = vpop.f32.mrf.mxu0
    %v1553 = vadd.f32 0.0, %v1552
    %1554 = vmatmul.f32.gmra.mxu0 %v977
    %v1555 = vpop.f32.mrf.mxu0
    %v1556 = vadd.f32 0.0, %v1555
    %1557 = vmatmul.f32.gmra.mxu0 %v980
    %v1558 = vpop.f32.mrf.mxu0
    %v1559 = vadd.f32 0.0, %v1558
    %1560 = vmatmul.f32.gmra.mxu0 %v983
    %v1561 = vpop.f32.mrf.mxu0
    %v1562 = vadd.f32 0.0, %v1561
    %1563 = vmatmul.f32.gmra.mxu0 %v986
    %v1564 = vpop.f32.mrf.mxu0
    %v1565 = vadd.f32 0.0, %v1564
    %1566 = vmatmul.f32.gmra.mxu0 %v989
    %v1567 = vpop.f32.mrf.mxu0
    %v1568 = vadd.f32 0.0, %v1567
    %1569 = vmatmul.f32.gmra.mxu0 %v992
    %v1570 = vpop.f32.mrf.mxu0
    %v1571 = vadd.f32 0.0, %v1570
    %1572 = vdwg.mxu0
    %v1573 = vmul.f32 %v851, %v1526
    %v1574 = vmul.f32 %v851, %v1529
    %v1575 = vmul.f32 %v851, %v1532
    %v1576 = vmul.f32 %v851, %v1535
    %v1577 = vmul.f32 %v851, %v1538
    %v1578 = vmul.f32 %v851, %v1541
    %v1579 = vmul.f32 %v851, %v1544
    %v1580 = vmul.f32 %v851, %v1547
    %v1581 = vmul.f32 %v851, %v1550
    %v1582 = vmul.f32 %v851, %v1553
    %v1583 = vmul.f32 %v851, %v1556
    %v1584 = vmul.f32 %v851, %v1559
    %v1585 = vmul.f32 %v851, %v1562
    %v1586 = vmul.f32 %v851, %v1565
    %v1587 = vmul.f32 %v851, %v1568
    %v1588 = vmul.f32 %v851, %v1571
    %v1589 = vadd.f32 %v1573, %v901
    %v1590 = vadd.f32 %v1574, %v902
    %v1591 = vadd.f32 %v1575, %v903
    %v1592 = vadd.f32 %v1576, %v904
    %v1593 = vadd.f32 %v1577, %v905
    %v1594 = vadd.f32 %v1578, %v906
    %v1595 = vadd.f32 %v1579, %v907
    %v1596 = vadd.f32 %v1580, %v908
    %v1597 = vadd.f32 %v1581, %v909
    %v1598 = vadd.f32 %v1582, %v910
    %v1599 = vadd.f32 %v1583, %v911
    %v1600 = vadd.f32 %v1584, %v912
    %v1601 = vadd.f32 %v1585, %v913
    %v1602 = vadd.f32 %v1586, %v914
    %v1603 = vadd.f32 %v1587, %v915
    %v1604 = vadd.f32 %v1588, %v916
    %s1605 = scalar_lea.vmem [#allocation6], 128
    %1606 = vst [vmem:[%s1605] sm:$0xff] %v1589
    %1607 = vst [vmem:[%s1605 + $0x8] sm:$0xff] %v1590
    %1608 = vst [vmem:[%s1605 + $0x10] sm:$0xff] %v1591
    %1609 = vst [vmem:[%s1605 + $0x18] sm:$0xff] %v1592
    %1610 = vst [vmem:[%s1605 + $0x20] sm:$0xff] %v1593
    %1611 = vst [vmem:[%s1605 + $0x28] sm:$0xff] %v1594
    %1612 = vst [vmem:[%s1605 + $0x30] sm:$0xff] %v1595
    %1613 = vst [vmem:[%s1605 + $0x38] sm:$0xff] %v1596
    %1614 = vst [vmem:[%s1605 + $0x40] sm:$0xff] %v1597
    %1615 = vst [vmem:[%s1605 + $0x48] sm:$0xff] %v1598
    %1616 = vst [vmem:[%s1605 + $0x50] sm:$0xff] %v1599
    %1617 = vst [vmem:[%s1605 + $0x58] sm:$0xff] %v1600
    %1618 = vst [vmem:[%s1605 + $0x60] sm:$0xff] %v1601
    %1619 = vst [vmem:[%s1605 + $0x68] sm:$0xff] %v1602
    %1620 = vst [vmem:[%s1605 + $0x70] sm:$0xff] %v1603
    %1621 = vst [vmem:[%s1605 + $0x78] sm:$0xff] %v1604
    // Predicated region
    $region22: #{tpu_custom_call.1} parent=1 // pred_check
      _
    $region23: #{tpu_custom_call.1} parent=1 // pred_check_branch
      %1623 = sbr.rel (0) target = $region25
    $region24: #{tpu_custom_call.1} parent=1 // pred_region
      %1625 = vsyncadd [#allocation5], 0
      %s1626 = sshll.u32 [#allocation6], 4
      %s1627 = int_to_ptr.vmem [resolvable:$true] %s1626
      %s1628 = sshll.u32 %s4, 4
      %s1629 = int_to_ptr.hbm [resolvable:$true] %s1628
      %1634 = dma.vmem_to_hbm [thread:$0]  %s1627, 4096, %s1629, [#allocation5], 128, 128, 8
    $region25: #{tpu_custom_call.1} parent=1 // pred_fallthru
      _
    // Predicated region
    $region26: #{tpu_custom_call.1} parent=1 // pred_check
      _
    $region27: #{tpu_custom_call.1} parent=1 // pred_check_branch
      %1636 = sbr.rel (0) target = $region29
    $region28: #{tpu_custom_call.1} parent=1 // pred_region
      %1638 = vsyncadd [#allocation8], 0
      %s1639 = sshll.u32 [#allocation7], 4
      %s1640 = int_to_ptr.vmem [resolvable:$true] %s1639
      %s1641 = sshll.u32 %s5, 4
      %s1642 = int_to_ptr.hbm [resolvable:$true] %s1641
      %1647 = dma.vmem_to_hbm [thread:$0]  %s1640, 4096, %s1642, [#allocation8], 128, 128, 8
    $region29: #{tpu_custom_call.1} parent=1 // pred_fallthru
      _
    // Predicated region
    $region30: #{tpu_custom_call.1} parent=1 // pred_check
      _
    $region31: #{tpu_custom_call.1} parent=1 // pred_check_branch
      %1649 = sbr.rel (0) target = $region33
    $region32: #{tpu_custom_call.1} parent=1 // pred_region
      %1651 = dma.done [#allocation5], 4096
    $region33: #{tpu_custom_call.1} parent=1 // pred_fallthru
      _
    // Predicated region
    $region34: #{tpu_custom_call.1} parent=1 // pred_check
      _
    $region35: #{tpu_custom_call.1} parent=1 // pred_check_branch
      %1653 = sbr.rel (0) target = $region37
    $region36: #{tpu_custom_call.1} parent=1 // pred_region
      %1655 = dma.done [#allocation8], 4096
    $region37: #{tpu_custom_call.1} parent=1 // pred_fallthru
      _
    %1656 = vsyncpa [#allocation4], 1
    %1657 = vsyncpa [#allocation5], 1
    %1658 = vsyncpa [#allocation8], 1

</llo_original>
